<compile_context>
chip_gen: v7x
topology: tpu7x:2x2x1
jax: 0.10.0
libtpu: 0.0.40
codegen_flags: <defaults>
</compile_context>

<pallas_src>
import functools

import jax
import jax.numpy as jnp
from jax.experimental import pallas as pl
from jax.experimental.pallas import tpu as pltpu

# ----------------------------- config (small, deterministic) -----------------------------
DIM = 32            # args.dim
N_USERS = 16
N_ITEMS = 16
N_NODES = N_USERS + N_ITEMS
N_ENTITY = 64
N_RELATION = 8
BATCH = 8           # args.batch_size
N_TRIPLES = 16      # triples per layer per sample
N_LAYER = 2         # args.n_layer
NUM_GCN_LAYERS = 2  # self.num_layers   (one_propagate)
LIGHTGCN_LAYERS = 3 # self.lightgcn_layer
C_TEMP = 0.2        # args.c_temp
AGG = "sum"         # args.agg


def _full_spec(shape):
    nd = len(shape)
    return pl.BlockSpec(shape, lambda i, _nd=nd: (0,) * _nd)


# ----------------------------- the single fused kernel -----------------------------
def _ckan_fused_kernel(graph3_ref, feats3_ref, hr_ref, t_ref,
                       w1_ref, w2_ref, w3_ref, sel_ref,
                       eu_base_ref, ev_base_ref,
                       scores_ref, loss_ref,
                       *, n_users, n_nodes, n_gcn_layers, n_lightgcn_layers,
                       n_layer, batch, n_triples, c_temp):
    f32 = jnp.float32
    bf16 = jnp.bfloat16
    two_n = 2 * n_nodes

    # -------- shared block-diag propagation: [graph1 | graph2 | interact] --------
    # NOTE: the reference divides by (i+2) before each per-row L2-normalize; spmm is linear
    # and the normalization cancels every such positive scale, so it is omitted here.
    graph3 = graph3_ref[...]                       # bf16 (3N, 3N)
    feats_bf = feats3_ref[...]                     # bf16 (3N, D) = [feats0; feats0; feats0]
    feats_f32 = feats_bf.astype(f32)

    cur = feats_bf
    acc_prop = feats_f32[0:two_n]                  # one_propagate accumulator (both graphs)
    acc_lg = feats_f32[two_n:]                     # LightGCN accumulator (ego)
    for layer in range(n_lightgcn_layers):         # 3 shared MXU passes total
        nxt = jnp.dot(graph3, cur, preferred_element_type=f32)      # (3N, D) f32
        if layer < n_gcn_layers:
            p = nxt[0:two_n]
            ssq = jnp.sum(p * p, axis=1, keepdims=True)
            acc_prop = acc_prop + p * jax.lax.rsqrt(jnp.maximum(ssq, 1e-24))  # F.normalize
        acc_lg = acc_lg + nxt[two_n:]
        cur = nxt.astype(bf16)

    users_f1 = acc_prop[0:n_users]
    items_f1 = acc_prop[n_users:n_nodes]
    users_f2 = acc_prop[n_nodes:n_nodes + n_users]
    items_f2 = acc_prop[n_nodes + n_users:]

    # -------- contrastive (InfoNCE) + BPR losses, all in VMEM --------
    def _l2n(x):
        ssq = jnp.sum(x * x, axis=1, keepdims=True)
        return x * jax.lax.rsqrt(jnp.maximum(ssq, 1e-24))

    def _infonce(a, b):
        an, bn = _l2n(a), _l2n(b)
        rowdot = jnp.sum(an * bn, axis=1, keepdims=True) / c_temp                 # (R, 1)
        ttl = jax.lax.dot_general(an, bn, (((1,), (1,)), ((), ())),
                                  preferred_element_type=f32) / c_temp            # (R, R)
        lse = jnp.log(jnp.sum(jnp.exp(ttl), axis=1, keepdims=True))               # (R, 1)
        # -mean(log(exp(rowdot) / sum exp(ttl))) == mean(lse - rowdot)
        return jnp.mean(lse - rowdot)

    def _bpr(a, b):
        # cal_loss_1: pred = 2 * rowwise-dot, pos = pred[0], negs = pred[1:]
        pred = 2.0 * jnp.sum(a * b, axis=1, keepdims=True)                        # (R, 1)
        diff = pred[0:1, :] - pred                                                # row 0 == 0
        row = jax.lax.broadcasted_iota(jnp.int32, diff.shape, 0)
        x = -diff
        softplus = jnp.maximum(x, 0.0) + jnp.log(1.0 + jnp.exp(-jnp.abs(x)))      # -log(sigmoid(diff))
        return jnp.sum(jnp.where(row > 0, softplus, 0.0)) / float(diff.shape[0] - 1)

    c_loss = ((_infonce(users_f1, users_f2) + _infonce(items_f1, items_f2)) / 2.0
              + _bpr(users_f1, users_f2) + _bpr(items_f1, items_f2))

    # -------- LightGCN layer mean + fused user/item row gather (one selector matmul) --------
    lgcn = (acc_lg * (1.0 / float(n_lightgcn_layers + 1))).astype(bf16)           # (N, D)
    ue_ie = jnp.dot(sel_ref[...], lgcn, preferred_element_type=f32)               # (2B, D)
    u_e_2 = ue_ie[0:batch]
    i_e_2 = ue_ie[batch:]

    # -------- knowledge attention: item-side (layer, sample) groups only --------
    # User-side attention is multiplied by an all-zero weight in us_aggrigate() (tanh(0)==0),
    # so it contributes nothing to scores or loss and is dropped entirely.
    hr = hr_ref[...]                                                              # bf16 (G*T, 2D)
    x1 = jnp.maximum(jnp.dot(hr, w1_ref[...], preferred_element_type=f32), 0.0)   # relu(cat(h,r)@W1)
    x2 = jnp.maximum(jnp.dot(x1.astype(bf16), w2_ref[...],
                             preferred_element_type=f32), 0.0)                    # relu(. @ W2)
    # w3 is replicated to (D, D) identical columns -> lane-dense logits, no cross-lane reduce.
    logit = jnp.dot(x2.astype(bf16), w3_ref[...], preferred_element_type=f32)     # (G*T, D)
    # sigmoid head then softmax over the triple axis; sigmoid in (0,1) -> no max-subtraction.
    p = jnp.exp(jax.nn.sigmoid(logit))                                            # (G*T, D) lane-dense
    pt = p * t_ref[...].astype(f32)                                               # (G*T, D)

    # in-kernel (constant) segment-sum matrix: seg[g, j] = 1 iff j in [g*T, (g+1)*T)
    n_groups = n_layer * batch
    total = n_groups * n_triples
    rows = jax.lax.broadcasted_iota(jnp.int32, (n_groups, total), 0)
    cols = jax.lax.broadcasted_iota(jnp.int32, (n_groups, total), 1)
    lo = rows * n_triples
    seg = jnp.logical_and(cols >= lo, cols < lo + n_triples).astype(bf16)         # (G, G*T)

    numer = jnp.dot(seg, pt.astype(bf16), preferred_element_type=f32)             # (G, D)
    denom = jnp.dot(seg, p.astype(bf16), preferred_element_type=f32)              # (G, D) identical cols
    emb = numer / denom                                                           # exact divide

    # -------- predict (agg == 'sum') --------
    e_u = eu_base_ref[...] + u_e_2
    e_v = ev_base_ref[...] + i_e_2
    for l in range(n_layer):
        e_v = e_v + emb[l * batch:(l + 1) * batch]
    s = jax.nn.sigmoid(jnp.sum(e_u * e_v, axis=1, keepdims=True))                 # (B, 1)

    # lane-dense stores (avoid masked narrow vst)
    scores_ref[...] = jnp.broadcast_to(s, scores_ref.shape)
    loss_ref[...] = jnp.broadcast_to(c_loss, loss_ref.shape)


def ckan_fused(graph3, feats3, hr_all, t_all, w1, w2, w3_mat, sel, eu_base, ev_base):
    batch = eu_base.shape[0]
    kernel = functools.partial(
        _ckan_fused_kernel,
        n_users=N_USERS, n_nodes=N_NODES,
        n_gcn_layers=NUM_GCN_LAYERS, n_lightgcn_layers=LIGHTGCN_LAYERS,
        n_layer=N_LAYER, batch=batch, n_triples=N_TRIPLES, c_temp=C_TEMP)
    ins = [graph3, feats3, hr_all, t_all, w1, w2, w3_mat, sel, eu_base, ev_base]
    return pl.pallas_call(
        kernel,
        out_shape=(jax.ShapeDtypeStruct((batch, 128), jnp.float32),
                   jax.ShapeDtypeStruct((1, 128), jnp.float32)),
        grid=(1,),
        in_specs=[_full_spec(a.shape) for a in ins],
        out_specs=(_full_spec((batch, 128)), _full_spec((1, 128))),
        compiler_params=pltpu.CompilerParams(dimension_semantics=("arbitrary",)),
    )(*ins)


# ----------------------------- plain-JAX glue -----------------------------
def laplace_transform(g):
    row = jnp.sum(g, axis=1)
    col = jnp.sum(g, axis=0)
    d_r = 1.0 / (jnp.sqrt(row) + 1e-8)
    d_c = 1.0 / (jnp.sqrt(col) + 1e-8)
    return d_r[:, None] * g * d_c[None, :]


def xavier_uniform(key, shape, fan_in, fan_out):
    bound = (6.0 / (fan_in + fan_out)) ** 0.5
    return jax.random.uniform(key, shape, jnp.float32, -bound, bound)


def init_params(key):
    ks = jax.random.split(key, 9)
    entity_emb = xavier_uniform(ks[0], (N_ENTITY, DIM), N_ENTITY, DIM)
    relation_emb = xavier_uniform(ks[1], (N_RELATION, DIM), N_RELATION, DIM)
    all_embed = xavier_uniform(ks[2], (N_NODES, DIM), N_NODES, DIM)
    # attention MLP weights stored as (in, out); torch Linear stores (out, in)
    w1 = xavier_uniform(ks[3], (2 * DIM, DIM), 2 * DIM, DIM)     # combined [W1h ; W1r]
    w2 = xavier_uniform(ks[4], (DIM, DIM), DIM, DIM)
    w3 = xavier_uniform(ks[5], (1, DIM), DIM, 1)
    # replicate w3 into identical columns -> lane-dense logit matmul inside the kernel
    w3_mat = jnp.broadcast_to(w3.T, (DIM, DIM))

    # dense stand-in for the sparse user-item graph + laplacian normalization
    R = (jax.random.uniform(ks[6], (N_USERS, N_ITEMS)) < 0.3).astype(jnp.float32)
    adj = jnp.block([[jnp.zeros((N_USERS, N_USERS)), R],
                     [R.T, jnp.zeros((N_ITEMS, N_ITEMS))]]).astype(jnp.float32)
    mask1 = jax.random.bernoulli(ks[7], 0.8, adj.shape).astype(jnp.float32)  # edge dropout 0.2
    mask2 = jax.random.bernoulli(ks[8], 0.8, adj.shape).astype(jnp.float32)
    graph1 = laplace_transform(adj * mask1)     # item_level_graph_1
    graph2 = laplace_transform(adj * mask2)     # item_level_graph_2
    interact = laplace_transform(adj)           # interact_mat / interact_graph
    z = jnp.zeros((N_NODES, N_NODES), jnp.float32)
    # all three graph ops (2x one_propagate + LightGCN) share one block-diag matmul chain
    graph3 = jnp.block([[graph1, z, z],
                        [z, graph2, z],
                        [z, z, interact]]).astype(jnp.bfloat16)

    return dict(entity_emb=entity_emb, relation_emb=relation_emb, all_embed=all_embed,
                w1=w1.astype(jnp.bfloat16), w2=w2.astype(jnp.bfloat16),
                w3_mat=w3_mat.astype(jnp.bfloat16), graph3=graph3)


def ckan_forward(params, items, users, user_triple_set, item_triple_set):
    ent = params["entity_emb"]
    rel = params["relation_emb"]
    feats0 = params["all_embed"]                                         # [user_emb ; item_emb]
    feats3 = jnp.concatenate([feats0, feats0, feats0], axis=0).astype(jnp.bfloat16)  # (3N, D)

    # Only the item-side triple blocks feed the attention slab (user side is dead, see kernel).
    h_blocks, r_blocks, t_blocks = [], [], []
    for i in range(N_LAYER):
        h_blocks.append(jnp.take(ent, item_triple_set[0][i], axis=0).reshape(-1, DIM))
        r_blocks.append(jnp.take(rel, item_triple_set[1][i], axis=0).reshape(-1, DIM))
        t_blocks.append(jnp.take(ent, item_triple_set[2][i], axis=0).reshape(-1, DIM))
    hr_all = jnp.concatenate([jnp.concatenate(h_blocks, axis=0),
                              jnp.concatenate(r_blocks, axis=0)], axis=1).astype(jnp.bfloat16)
    t_all = jnp.concatenate(t_blocks, axis=0).astype(jnp.bfloat16)       # (G*T, D)

    # fused user/item row selector for a single LightGCN gather matmul
    sel = jnp.concatenate(
        [jax.nn.one_hot(users, N_NODES, dtype=jnp.bfloat16),
         jax.nn.one_hot(items + N_USERS, N_NODES, dtype=jnp.bfloat16)], axis=0)   # (2B, N)

    # user_embeddings[0] and item_embeddings[0] + trailing head-mean term (agg == 'sum')
    eu_base = jnp.mean(jnp.take(ent, user_triple_set[0][0], axis=0), axis=1)          # (B, D)
    ev_base = (jnp.take(ent, items, axis=0)
               + jnp.mean(jnp.take(ent, item_triple_set[0][0], axis=0), axis=1))      # (B, D)

    scores_slab, loss_slab = ckan_fused(
        params["graph3"], feats3, hr_all, t_all,
        params["w1"], params["w2"], params["w3_mat"],
        sel, eu_base, ev_base)
    return scores_slab[:, 0], loss_slab[0, 0]


if __name__ == "__main__":
    key = jax.random.PRNGKey(0)
    k_par, k_in = jax.random.split(key)
    params = init_params(k_par)

    ks = jax.random.split(k_in, 2 + 6 * N_LAYER)
    items = jax.random.randint(ks[0], (BATCH,), 0, N_ITEMS, dtype=jnp.int32)
    users = jax.random.randint(ks[1], (BATCH,), 0, N_USERS, dtype=jnp.int32)

    def make_triple_set(keys):
        heads, rels, tails = [], [], []
        for i in range(N_LAYER):
            heads.append(jax.random.randint(keys[3 * i + 0], (BATCH, N_TRIPLES), 0, N_ENTITY, dtype=jnp.int32))
            rels.append(jax.random.randint(keys[3 * i + 1], (BATCH, N_TRIPLES), 0, N_RELATION, dtype=jnp.int32))
            tails.append(jax.random.randint(keys[3 * i + 2], (BATCH, N_TRIPLES), 0, N_ENTITY, dtype=jnp.int32))
        return (tuple(heads), tuple(rels), tuple(tails))

    user_triple_set = make_triple_set(ks[2:2 + 3 * N_LAYER])
    item_triple_set = make_triple_set(ks[2 + 3 * N_LAYER:])

    fwd = jax.jit(ckan_forward)
    scores, c_loss = fwd(params, items, users, user_triple_set, item_triple_set)
    jax.block_until_ready((scores, c_loss))
    assert scores.shape == (BATCH,)
    assert bool(jnp.isfinite(c_loss))
    assert bool(jnp.all(jnp.isfinite(scores)))
    print("KERNEL_OK")
</pallas_src>

<mosaic_0001>
module attributes {stable_mosaic.version = 11 : i64} {
  func.func @_ckan_fused_kernel(%arg0: i32, %arg1: memref<96x96xbf16, #tpu.memory_space<vmem>>, %arg2: memref<96x32xbf16, #tpu.memory_space<vmem>>, %arg3: memref<256x64xbf16, #tpu.memory_space<vmem>>, %arg4: memref<256x32xbf16, #tpu.memory_space<vmem>>, %arg5: memref<64x32xbf16, #tpu.memory_space<vmem>>, %arg6: memref<32x32xbf16, #tpu.memory_space<vmem>>, %arg7: memref<32x32xbf16, #tpu.memory_space<vmem>>, %arg8: memref<16x32xbf16, #tpu.memory_space<vmem>>, %arg9: memref<8x32xf32, #tpu.memory_space<vmem>>, %arg10: memref<8x32xf32, #tpu.memory_space<vmem>>, %arg11: memref<8x128xf32, #tpu.memory_space<vmem>>, %arg12: memref<1x128xf32, #tpu.memory_space<vmem>>) attributes {dimension_semantics = [#tpu.dimension_semantics<arbitrary>], iteration_bounds = array<i64: 1>, scalar_prefetch = 0 : i64, scratch_operands = 0 : i64, tpu.core_type = #tpu.core_type<tc>, window_params = [{pipeline_mode = #tpu.pipeline_mode<synchronous>, transform_indices = @transform_0, window_bounds = array<i64: 96, 96>}, {pipeline_mode = #tpu.pipeline_mode<synchronous>, transform_indices = @transform_1, window_bounds = array<i64: 96, 32>}, {pipeline_mode = #tpu.pipeline_mode<synchronous>, transform_indices = @transform_2, window_bounds = array<i64: 256, 64>}, {pipeline_mode = #tpu.pipeline_mode<synchronous>, transform_indices = @transform_3, window_bounds = array<i64: 256, 32>}, {pipeline_mode = #tpu.pipeline_mode<synchronous>, transform_indices = @transform_4, window_bounds = array<i64: 64, 32>}, {pipeline_mode = #tpu.pipeline_mode<synchronous>, transform_indices = @transform_5, window_bounds = array<i64: 32, 32>}, {pipeline_mode = #tpu.pipeline_mode<synchronous>, transform_indices = @transform_6, window_bounds = array<i64: 32, 32>}, {pipeline_mode = #tpu.pipeline_mode<synchronous>, transform_indices = @transform_7, window_bounds = array<i64: 16, 32>}, {pipeline_mode = #tpu.pipeline_mode<synchronous>, transform_indices = @transform_8, window_bounds = array<i64: 8, 32>}, {pipeline_mode = #tpu.pipeline_mode<synchronous>, transform_indices = @transform_9, window_bounds = array<i64: 8, 32>}, {pipeline_mode = #tpu.pipeline_mode<synchronous>, transform_indices = @transform_10, window_bounds = array<i64: 8, 128>}, {pipeline_mode = #tpu.pipeline_mode<synchronous>, transform_indices = @transform_11, window_bounds = array<i64: 1, 128>}]} {
    %c0 = arith.constant 0 : index
    %c0_0 = arith.constant 0 : index
    %0 = vector.load %arg1[%c0, %c0_0] : memref<96x96xbf16, #tpu.memory_space<vmem>>, vector<96x96xbf16>
    %c0_1 = arith.constant 0 : index
    %c0_2 = arith.constant 0 : index
    %1 = vector.load %arg2[%c0_1, %c0_2] : memref<96x32xbf16, #tpu.memory_space<vmem>>, vector<96x32xbf16>
    %2 = arith.extf %1 : vector<96x32xbf16> to vector<96x32xf32>
    %3 = vector.extract_strided_slice %2 {offsets = [0, 0], sizes = [64, 32], strides = [1, 1]} : vector<96x32xf32> to vector<64x32xf32>
    %4 = vector.extract_strided_slice %2 {offsets = [64, 0], sizes = [32, 32], strides = [1, 1]} : vector<96x32xf32> to vector<32x32xf32>
    %cst = arith.constant dense<0.000000e+00> : vector<96x32xf32>
    %5 = tpu.matmul %0, %1, %cst {dimension_numbers = #tpu.dot_dimension_numbers<[1], [0], [0], [1], [0, 0, 1, 1], [], []>} : vector<96x96xbf16>, vector<96x32xbf16>, vector<96x32xf32> -> vector<96x32xf32>
    %6 = vector.extract_strided_slice %5 {offsets = [0, 0], sizes = [64, 32], strides = [1, 1]} : vector<96x32xf32> to vector<64x32xf32>
    %7 = arith.mulf %6, %6 : vector<64x32xf32>
    %cst_3 = arith.constant dense<0.000000e+00> : vector<64xf32>
    %8 = vector.multi_reduction <add>, %7, %cst_3 [1] : vector<64x32xf32> to vector<64xf32>
    %9 = vector.shape_cast %8 : vector<64xf32> to vector<64x1xf32>
    %cst_4 = arith.constant 1.000000e-24 : f32
    %10 = vector.broadcast %cst_4 : f32 to vector<64x1xf32>
    %11 = arith.maximumf %9, %10 : vector<64x1xf32>
    %12 = math.rsqrt %11 : vector<64x1xf32>
    %13 = vector.broadcast %12 : vector<64x1xf32> to vector<64x32xf32>
    %14 = arith.mulf %6, %13 : vector<64x32xf32>
    %15 = arith.addf %3, %14 : vector<64x32xf32>
    %16 = vector.extract_strided_slice %5 {offsets = [64, 0], sizes = [32, 32], strides = [1, 1]} : vector<96x32xf32> to vector<32x32xf32>
    %17 = arith.addf %4, %16 : vector<32x32xf32>
    %18 = arith.truncf %5 : vector<96x32xf32> to vector<96x32xbf16>
    %cst_5 = arith.constant dense<0.000000e+00> : vector<96x32xf32>
    %19 = tpu.matmul %0, %18, %cst_5 {dimension_numbers = #tpu.dot_dimension_numbers<[1], [0], [0], [1], [0, 0, 1, 1], [], []>} : vector<96x96xbf16>, vector<96x32xbf16>, vector<96x32xf32> -> vector<96x32xf32>
    %20 = vector.extract_strided_slice %19 {offsets = [0, 0], sizes = [64, 32], strides = [1, 1]} : vector<96x32xf32> to vector<64x32xf32>
    %21 = arith.mulf %20, %20 : vector<64x32xf32>
    %cst_6 = arith.constant dense<0.000000e+00> : vector<64xf32>
    %22 = vector.multi_reduction <add>, %21, %cst_6 [1] : vector<64x32xf32> to vector<64xf32>
    %23 = vector.shape_cast %22 : vector<64xf32> to vector<64x1xf32>
    %cst_7 = arith.constant 1.000000e-24 : f32
    %24 = vector.broadcast %cst_7 : f32 to vector<64x1xf32>
    %25 = arith.maximumf %23, %24 : vector<64x1xf32>
    %26 = math.rsqrt %25 : vector<64x1xf32>
    %27 = vector.broadcast %26 : vector<64x1xf32> to vector<64x32xf32>
    %28 = arith.mulf %20, %27 : vector<64x32xf32>
    %29 = arith.addf %15, %28 : vector<64x32xf32>
    %30 = vector.extract_strided_slice %19 {offsets = [64, 0], sizes = [32, 32], strides = [1, 1]} : vector<96x32xf32> to vector<32x32xf32>
    %31 = arith.addf %17, %30 : vector<32x32xf32>
    %32 = arith.truncf %19 : vector<96x32xf32> to vector<96x32xbf16>
    %cst_8 = arith.constant dense<0.000000e+00> : vector<96x32xf32>
    %33 = tpu.matmul %0, %32, %cst_8 {dimension_numbers = #tpu.dot_dimension_numbers<[1], [0], [0], [1], [0, 0, 1, 1], [], []>} : vector<96x96xbf16>, vector<96x32xbf16>, vector<96x32xf32> -> vector<96x32xf32>
    %34 = vector.extract_strided_slice %33 {offsets = [64, 0], sizes = [32, 32], strides = [1, 1]} : vector<96x32xf32> to vector<32x32xf32>
    %35 = arith.addf %31, %34 : vector<32x32xf32>
    %36 = vector.extract_strided_slice %29 {offsets = [0, 0], sizes = [16, 32], strides = [1, 1]} : vector<64x32xf32> to vector<16x32xf32>
    %37 = vector.extract_strided_slice %29 {offsets = [16, 0], sizes = [16, 32], strides = [1, 1]} : vector<64x32xf32> to vector<16x32xf32>
    %38 = vector.extract_strided_slice %29 {offsets = [32, 0], sizes = [16, 32], strides = [1, 1]} : vector<64x32xf32> to vector<16x32xf32>
    %39 = vector.extract_strided_slice %29 {offsets = [48, 0], sizes = [16, 32], strides = [1, 1]} : vector<64x32xf32> to vector<16x32xf32>
    %40 = arith.mulf %36, %36 : vector<16x32xf32>
    %cst_9 = arith.constant dense<0.000000e+00> : vector<16xf32>
    %41 = vector.multi_reduction <add>, %40, %cst_9 [1] : vector<16x32xf32> to vector<16xf32>
    %42 = vector.shape_cast %41 : vector<16xf32> to vector<16x1xf32>
    %cst_10 = arith.constant 1.000000e-24 : f32
    %43 = vector.broadcast %cst_10 : f32 to vector<16x1xf32>
    %44 = arith.maximumf %42, %43 : vector<16x1xf32>
    %45 = math.rsqrt %44 : vector<16x1xf32>
    %46 = vector.broadcast %45 : vector<16x1xf32> to vector<16x32xf32>
    %47 = arith.mulf %36, %46 : vector<16x32xf32>
    %48 = arith.mulf %38, %38 : vector<16x32xf32>
    %cst_11 = arith.constant dense<0.000000e+00> : vector<16xf32>
    %49 = vector.multi_reduction <add>, %48, %cst_11 [1] : vector<16x32xf32> to vector<16xf32>
    %50 = vector.shape_cast %49 : vector<16xf32> to vector<16x1xf32>
    %cst_12 = arith.constant 1.000000e-24 : f32
    %51 = vector.broadcast %cst_12 : f32 to vector<16x1xf32>
    %52 = arith.maximumf %50, %51 : vector<16x1xf32>
    %53 = math.rsqrt %52 : vector<16x1xf32>
    %54 = vector.broadcast %53 : vector<16x1xf32> to vector<16x32xf32>
    %55 = arith.mulf %38, %54 : vector<16x32xf32>
    %56 = arith.mulf %47, %55 : vector<16x32xf32>
    %cst_13 = arith.constant dense<0.000000e+00> : vector<16xf32>
    %57 = vector.multi_reduction <add>, %56, %cst_13 [1] : vector<16x32xf32> to vector<16xf32>
    %58 = vector.shape_cast %57 : vector<16xf32> to vector<16x1xf32>
    %cst_14 = arith.constant 2.000000e-01 : f32
    %59 = vector.broadcast %cst_14 : f32 to vector<16x1xf32>
    %60 = arith.divf %58, %59 : vector<16x1xf32>
    %cst_15 = arith.constant dense<0.000000e+00> : vector<16x16xf32>
    %61 = tpu.matmul %47, %55, %cst_15 {dimension_numbers = #tpu.dot_dimension_numbers<[1], [1], [0], [0], [0, 0, 1, 0], [], []>} : vector<16x32xf32>, vector<16x32xf32>, vector<16x16xf32> -> vector<16x16xf32>
    %cst_16 = arith.constant 2.000000e-01 : f32
    %62 = vector.broadcast %cst_16 : f32 to vector<16x16xf32>
    %63 = arith.divf %61, %62 : vector<16x16xf32>
    %64 = math.exp %63 : vector<16x16xf32>
    %cst_17 = arith.constant dense<0.000000e+00> : vector<16xf32>
    %65 = vector.multi_reduction <add>, %64, %cst_17 [1] : vector<16x16xf32> to vector<16xf32>
    %66 = vector.shape_cast %65 : vector<16xf32> to vector<16x1xf32>
    %67 = math.log %66 : vector<16x1xf32>
    %68 = arith.subf %67, %60 : vector<16x1xf32>
    %69 = vector.shape_cast %68 : vector<16x1xf32> to vector<1x16x1xf32>
    %cst_18 = arith.constant dense<0.000000e+00> : vector<1xf32>
    %70 = vector.multi_reduction <add>, %69, %cst_18 [1, 2] : vector<1x16x1xf32> to vector<1xf32>
    %71 = vector.shape_cast %70 : vector<1xf32> to vector<1x1x1xf32>
    %72 = vector.extract %71[0, 0, 0] : f32 from vector<1x1x1xf32>
    %cst_19 = arith.constant 1.600000e+01 : f32
    %73 = arith.divf %72, %cst_19 : f32
    %74 = arith.mulf %37, %37 : vector<16x32xf32>
    %cst_20 = arith.constant dense<0.000000e+00> : vector<16xf32>
    %75 = vector.multi_reduction <add>, %74, %cst_20 [1] : vector<16x32xf32> to vector<16xf32>
    %76 = vector.shape_cast %75 : vector<16xf32> to vector<16x1xf32>
    %cst_21 = arith.constant 1.000000e-24 : f32
    %77 = vector.broadcast %cst_21 : f32 to vector<16x1xf32>
    %78 = arith.maximumf %76, %77 : vector<16x1xf32>
    %79 = math.rsqrt %78 : vector<16x1xf32>
    %80 = vector.broadcast %79 : vector<16x1xf32> to vector<16x32xf32>
    %81 = arith.mulf %37, %80 : vector<16x32xf32>
    %82 = arith.mulf %39, %39 : vector<16x32xf32>
    %cst_22 = arith.constant dense<0.000000e+00> : vector<16xf32>
    %83 = vector.multi_reduction <add>, %82, %cst_22 [1] : vector<16x32xf32> to vector<16xf32>
    %84 = vector.shape_cast %83 : vector<16xf32> to vector<16x1xf32>
    %cst_23 = arith.constant 1.000000e-24 : f32
    %85 = vector.broadcast %cst_23 : f32 to vector<16x1xf32>
    %86 = arith.maximumf %84, %85 : vector<16x1xf32>
    %87 = math.rsqrt %86 : vector<16x1xf32>
    %88 = vector.broadcast %87 : vector<16x1xf32> to vector<16x32xf32>
    %89 = arith.mulf %39, %88 : vector<16x32xf32>
    %90 = arith.mulf %81, %89 : vector<16x32xf32>
    %cst_24 = arith.constant dense<0.000000e+00> : vector<16xf32>
    %91 = vector.multi_reduction <add>, %90, %cst_24 [1] : vector<16x32xf32> to vector<16xf32>
    %92 = vector.shape_cast %91 : vector<16xf32> to vector<16x1xf32>
    %cst_25 = arith.constant 2.000000e-01 : f32
    %93 = vector.broadcast %cst_25 : f32 to vector<16x1xf32>
    %94 = arith.divf %92, %93 : vector<16x1xf32>
    %cst_26 = arith.constant dense<0.000000e+00> : vector<16x16xf32>
    %95 = tpu.matmul %81, %89, %cst_26 {dimension_numbers = #tpu.dot_dimension_numbers<[1], [1], [0], [0], [0, 0, 1, 0], [], []>} : vector<16x32xf32>, vector<16x32xf32>, vector<16x16xf32> -> vector<16x16xf32>
    %cst_27 = arith.constant 2.000000e-01 : f32
    %96 = vector.broadcast %cst_27 : f32 to vector<16x16xf32>
    %97 = arith.divf %95, %96 : vector<16x16xf32>
    %98 = math.exp %97 : vector<16x16xf32>
    %cst_28 = arith.constant dense<0.000000e+00> : vector<16xf32>
    %99 = vector.multi_reduction <add>, %98, %cst_28 [1] : vector<16x16xf32> to vector<16xf32>
    %100 = vector.shape_cast %99 : vector<16xf32> to vector<16x1xf32>
    %101 = math.log %100 : vector<16x1xf32>
    %102 = arith.subf %101, %94 : vector<16x1xf32>
    %103 = vector.shape_cast %102 : vector<16x1xf32> to vector<1x16x1xf32>
    %cst_29 = arith.constant dense<0.000000e+00> : vector<1xf32>
    %104 = vector.multi_reduction <add>, %103, %cst_29 [1, 2] : vector<1x16x1xf32> to vector<1xf32>
    %105 = vector.shape_cast %104 : vector<1xf32> to vector<1x1x1xf32>
    %106 = vector.extract %105[0, 0, 0] : f32 from vector<1x1x1xf32>
    %cst_30 = arith.constant 1.600000e+01 : f32
    %107 = arith.divf %106, %cst_30 : f32
    %108 = arith.addf %73, %107 : f32
    %cst_31 = arith.constant 2.000000e+00 : f32
    %109 = arith.divf %108, %cst_31 : f32
    %110 = arith.mulf %36, %38 : vector<16x32xf32>
    %cst_32 = arith.constant dense<0.000000e+00> : vector<16xf32>
    %111 = vector.multi_reduction <add>, %110, %cst_32 [1] : vector<16x32xf32> to vector<16xf32>
    %112 = vector.shape_cast %111 : vector<16xf32> to vector<16x1xf32>
    %cst_33 = arith.constant 2.000000e+00 : f32
    %113 = vector.broadcast %cst_33 : f32 to vector<16x1xf32>
    %114 = arith.mulf %113, %112 : vector<16x1xf32>
    %115 = vector.extract_strided_slice %114 {offsets = [0, 0], sizes = [1, 1], strides = [1, 1]} : vector<16x1xf32> to vector<1x1xf32>
    %116 = vector.broadcast %115 : vector<1x1xf32> to vector<16x1xf32>
    %117 = arith.subf %116, %114 : vector<16x1xf32>
    %118 = tpu.iota {dimensions = array<i32: 0>} : vector<16x1xi32>
    %cst_34 = arith.constant 0.000000e+00 : f32
    %119 = vector.broadcast %cst_34 : f32 to vector<16x1xf32>
    %120 = arith.subf %119, %117 : vector<16x1xf32>
    %cst_35 = arith.constant 0.000000e+00 : f32
    %121 = vector.broadcast %cst_35 : f32 to vector<16x1xf32>
    %122 = arith.maximumf %120, %121 : vector<16x1xf32>
    %123 = math.absf %120 : vector<16x1xf32>
    %cst_36 = arith.constant 0.000000e+00 : f32
    %124 = vector.broadcast %cst_36 : f32 to vector<16x1xf32>
    %125 = arith.subf %124, %123 : vector<16x1xf32>
    %126 = math.exp %125 : vector<16x1xf32>
    %cst_37 = arith.constant 1.000000e+00 : f32
    %127 = vector.broadcast %cst_37 : f32 to vector<16x1xf32>
    %128 = arith.addf %127, %126 : vector<16x1xf32>
    %129 = math.log %128 : vector<16x1xf32>
    %130 = arith.addf %122, %129 : vector<16x1xf32>
    %c0_i32 = arith.constant 0 : i32
    %131 = vector.broadcast %c0_i32 : i32 to vector<16x1xi32>
    %132 = arith.cmpi sgt, %118, %131 : vector<16x1xi32>
    %cst_38 = arith.constant 0.000000e+00 : f32
    %133 = vector.broadcast %cst_38 : f32 to vector<16x1xf32>
    %134 = arith.select %132, %130, %133 : vector<16x1xi1>, vector<16x1xf32>
    %135 = vector.shape_cast %134 : vector<16x1xf32> to vector<1x16x1xf32>
    %cst_39 = arith.constant dense<0.000000e+00> : vector<1xf32>
    %136 = vector.multi_reduction <add>, %135, %cst_39 [1, 2] : vector<1x16x1xf32> to vector<1xf32>
    %137 = vector.shape_cast %136 : vector<1xf32> to vector<1x1x1xf32>
    %138 = vector.extract %137[0, 0, 0] : f32 from vector<1x1x1xf32>
    %cst_40 = arith.constant 1.500000e+01 : f32
    %139 = arith.divf %138, %cst_40 : f32
    %140 = arith.addf %109, %139 : f32
    %141 = arith.mulf %37, %39 : vector<16x32xf32>
    %cst_41 = arith.constant dense<0.000000e+00> : vector<16xf32>
    %142 = vector.multi_reduction <add>, %141, %cst_41 [1] : vector<16x32xf32> to vector<16xf32>
    %143 = vector.shape_cast %142 : vector<16xf32> to vector<16x1xf32>
    %cst_42 = arith.constant 2.000000e+00 : f32
    %144 = vector.broadcast %cst_42 : f32 to vector<16x1xf32>
    %145 = arith.mulf %144, %143 : vector<16x1xf32>
    %146 = vector.extract_strided_slice %145 {offsets = [0, 0], sizes = [1, 1], strides = [1, 1]} : vector<16x1xf32> to vector<1x1xf32>
    %147 = vector.broadcast %146 : vector<1x1xf32> to vector<16x1xf32>
    %148 = arith.subf %147, %145 : vector<16x1xf32>
    %149 = tpu.iota {dimensions = array<i32: 0>} : vector<16x1xi32>
    %cst_43 = arith.constant 0.000000e+00 : f32
    %150 = vector.broadcast %cst_43 : f32 to vector<16x1xf32>
    %151 = arith.subf %150, %148 : vector<16x1xf32>
    %cst_44 = arith.constant 0.000000e+00 : f32
    %152 = vector.broadcast %cst_44 : f32 to vector<16x1xf32>
    %153 = arith.maximumf %151, %152 : vector<16x1xf32>
    %154 = math.absf %151 : vector<16x1xf32>
    %cst_45 = arith.constant 0.000000e+00 : f32
    %155 = vector.broadcast %cst_45 : f32 to vector<16x1xf32>
    %156 = arith.subf %155, %154 : vector<16x1xf32>
    %157 = math.exp %156 : vector<16x1xf32>
    %cst_46 = arith.constant 1.000000e+00 : f32
    %158 = vector.broadcast %cst_46 : f32 to vector<16x1xf32>
    %159 = arith.addf %158, %157 : vector<16x1xf32>
    %160 = math.log %159 : vector<16x1xf32>
    %161 = arith.addf %153, %160 : vector<16x1xf32>
    %c0_i32_47 = arith.constant 0 : i32
    %162 = vector.broadcast %c0_i32_47 : i32 to vector<16x1xi32>
    %163 = arith.cmpi sgt, %149, %162 : vector<16x1xi32>
    %cst_48 = arith.constant 0.000000e+00 : f32
    %164 = vector.broadcast %cst_48 : f32 to vector<16x1xf32>
    %165 = arith.select %163, %161, %164 : vector<16x1xi1>, vector<16x1xf32>
    %166 = vector.shape_cast %165 : vector<16x1xf32> to vector<1x16x1xf32>
    %cst_49 = arith.constant dense<0.000000e+00> : vector<1xf32>
    %167 = vector.multi_reduction <add>, %166, %cst_49 [1, 2] : vector<1x16x1xf32> to vector<1xf32>
    %168 = vector.shape_cast %167 : vector<1xf32> to vector<1x1x1xf32>
    %169 = vector.extract %168[0, 0, 0] : f32 from vector<1x1x1xf32>
    %cst_50 = arith.constant 1.500000e+01 : f32
    %170 = arith.divf %169, %cst_50 : f32
    %171 = arith.addf %140, %170 : f32
    %cst_51 = arith.constant 2.500000e-01 : f32
    %172 = vector.broadcast %cst_51 : f32 to vector<32x32xf32>
    %173 = arith.mulf %35, %172 : vector<32x32xf32>
    %174 = arith.truncf %173 : vector<32x32xf32> to vector<32x32xbf16>
    %c0_52 = arith.constant 0 : index
    %c0_53 = arith.constant 0 : index
    %175 = vector.load %arg8[%c0_52, %c0_53] : memref<16x32xbf16, #tpu.memory_space<vmem>>, vector<16x32xbf16>
    %cst_54 = arith.constant dense<0.000000e+00> : vector<16x32xf32>
    %176 = tpu.matmul %175, %174, %cst_54 {dimension_numbers = #tpu.dot_dimension_numbers<[1], [0], [0], [1], [0, 0, 1, 1], [], []>} : vector<16x32xbf16>, vector<32x32xbf16>, vector<16x32xf32> -> vector<16x32xf32>
    %177 = vector.extract_strided_slice %176 {offsets = [0, 0], sizes = [8, 32], strides = [1, 1]} : vector<16x32xf32> to vector<8x32xf32>
    %178 = vector.extract_strided_slice %176 {offsets = [8, 0], sizes = [8, 32], strides = [1, 1]} : vector<16x32xf32> to vector<8x32xf32>
    %c0_55 = arith.constant 0 : index
    %c0_56 = arith.constant 0 : index
    %179 = vector.load %arg3[%c0_55, %c0_56] : memref<256x64xbf16, #tpu.memory_space<vmem>>, vector<256x64xbf16>
    %c0_57 = arith.constant 0 : index
    %c0_58 = arith.constant 0 : index
    %180 = vector.load %arg5[%c0_57, %c0_58] : memref<64x32xbf16, #tpu.memory_space<vmem>>, vector<64x32xbf16>
    %cst_59 = arith.constant dense<0.000000e+00> : vector<256x32xf32>
    %181 = tpu.matmul %179, %180, %cst_59 {dimension_numbers = #tpu.dot_dimension_numbers<[1], [0], [0], [1], [0, 0, 1, 1], [], []>} : vector<256x64xbf16>, vector<64x32xbf16>, vector<256x32xf32> -> vector<256x32xf32>
    %cst_60 = arith.constant 0.000000e+00 : f32
    %182 = vector.broadcast %cst_60 : f32 to vector<256x32xf32>
    %183 = arith.maximumf %181, %182 : vector<256x32xf32>
    %184 = arith.truncf %183 : vector<256x32xf32> to vector<256x32xbf16>
    %c0_61 = arith.constant 0 : index
    %c0_62 = arith.constant 0 : index
    %185 = vector.load %arg6[%c0_61, %c0_62] : memref<32x32xbf16, #tpu.memory_space<vmem>>, vector<32x32xbf16>
    %cst_63 = arith.constant dense<0.000000e+00> : vector<256x32xf32>
    %186 = tpu.matmul %184, %185, %cst_63 {dimension_numbers = #tpu.dot_dimension_numbers<[1], [0], [0], [1], [0, 0, 1, 1], [], []>} : vector<256x32xbf16>, vector<32x32xbf16>, vector<256x32xf32> -> vector<256x32xf32>
    %cst_64 = arith.constant 0.000000e+00 : f32
    %187 = vector.broadcast %cst_64 : f32 to vector<256x32xf32>
    %188 = arith.maximumf %186, %187 : vector<256x32xf32>
    %189 = arith.truncf %188 : vector<256x32xf32> to vector<256x32xbf16>
    %c0_65 = arith.constant 0 : index
    %c0_66 = arith.constant 0 : index
    %190 = vector.load %arg7[%c0_65, %c0_66] : memref<32x32xbf16, #tpu.memory_space<vmem>>, vector<32x32xbf16>
    %cst_67 = arith.constant dense<0.000000e+00> : vector<256x32xf32>
    %191 = tpu.matmul %189, %190, %cst_67 {dimension_numbers = #tpu.dot_dimension_numbers<[1], [0], [0], [1], [0, 0, 1, 1], [], []>} : vector<256x32xbf16>, vector<32x32xbf16>, vector<256x32xf32> -> vector<256x32xf32>
    %192 = arith.negf %191 : vector<256x32xf32>
    %193 = math.exp %192 : vector<256x32xf32>
    %cst_68 = arith.constant 1.000000e+00 : f32
    %194 = vector.broadcast %cst_68 : f32 to vector<256x32xf32>
    %195 = arith.addf %194, %193 : vector<256x32xf32>
    %196 = arith.divf %194, %195 : vector<256x32xf32>
    %197 = math.exp %196 : vector<256x32xf32>
    %c0_69 = arith.constant 0 : index
    %c0_70 = arith.constant 0 : index
    %198 = vector.load %arg4[%c0_69, %c0_70] : memref<256x32xbf16, #tpu.memory_space<vmem>>, vector<256x32xbf16>
    %199 = arith.extf %198 : vector<256x32xbf16> to vector<256x32xf32>
    %200 = arith.mulf %197, %199 : vector<256x32xf32>
    %201 = tpu.iota {dimensions = array<i32: 0>} : vector<16x256xi32>
    %202 = tpu.iota {dimensions = array<i32: 1>} : vector<16x256xi32>
    %c16_i32 = arith.constant 16 : i32
    %203 = vector.broadcast %c16_i32 : i32 to vector<16x256xi32>
    %204 = arith.muli %201, %203 : vector<16x256xi32>
    %205 = arith.cmpi sge, %202, %204 : vector<16x256xi32>
    %c16_i32_71 = arith.constant 16 : i32
    %206 = vector.broadcast %c16_i32_71 : i32 to vector<16x256xi32>
    %207 = arith.addi %204, %206 : vector<16x256xi32>
    %208 = arith.cmpi slt, %202, %207 : vector<16x256xi32>
    %209 = arith.andi %205, %208 : vector<16x256xi1>
    %210 = arith.extui %209 : vector<16x256xi1> to vector<16x256xi32>
    %211 = arith.sitofp %210 : vector<16x256xi32> to vector<16x256xf32>
    %212 = arith.truncf %211 : vector<16x256xf32> to vector<16x256xbf16>
    %213 = arith.truncf %200 : vector<256x32xf32> to vector<256x32xbf16>
    %cst_72 = arith.constant dense<0.000000e+00> : vector<16x32xf32>
    %214 = tpu.matmul %212, %213, %cst_72 {dimension_numbers = #tpu.dot_dimension_numbers<[1], [0], [0], [1], [0, 0, 1, 1], [], []>} : vector<16x256xbf16>, vector<256x32xbf16>, vector<16x32xf32> -> vector<16x32xf32>
    %215 = arith.truncf %197 : vector<256x32xf32> to vector<256x32xbf16>
    %cst_73 = arith.constant dense<0.000000e+00> : vector<16x32xf32>
    %216 = tpu.matmul %212, %215, %cst_73 {dimension_numbers = #tpu.dot_dimension_numbers<[1], [0], [0], [1], [0, 0, 1, 1], [], []>} : vector<16x256xbf16>, vector<256x32xbf16>, vector<16x32xf32> -> vector<16x32xf32>
    %217 = arith.divf %214, %216 : vector<16x32xf32>
    %c0_74 = arith.constant 0 : index
    %c0_75 = arith.constant 0 : index
    %218 = vector.load %arg9[%c0_74, %c0_75] : memref<8x32xf32, #tpu.memory_space<vmem>>, vector<8x32xf32>
    %219 = arith.addf %218, %177 : vector<8x32xf32>
    %c0_76 = arith.constant 0 : index
    %c0_77 = arith.constant 0 : index
    %220 = vector.load %arg10[%c0_76, %c0_77] : memref<8x32xf32, #tpu.memory_space<vmem>>, vector<8x32xf32>
    %221 = arith.addf %220, %178 : vector<8x32xf32>
    %222 = vector.extract_strided_slice %217 {offsets = [0, 0], sizes = [8, 32], strides = [1, 1]} : vector<16x32xf32> to vector<8x32xf32>
    %223 = arith.addf %221, %222 : vector<8x32xf32>
    %224 = vector.extract_strided_slice %217 {offsets = [8, 0], sizes = [8, 32], strides = [1, 1]} : vector<16x32xf32> to vector<8x32xf32>
    %225 = arith.addf %223, %224 : vector<8x32xf32>
    %226 = arith.mulf %219, %225 : vector<8x32xf32>
    %cst_78 = arith.constant dense<0.000000e+00> : vector<8xf32>
    %227 = vector.multi_reduction <add>, %226, %cst_78 [1] : vector<8x32xf32> to vector<8xf32>
    %228 = vector.shape_cast %227 : vector<8xf32> to vector<8x1xf32>
    %229 = arith.negf %228 : vector<8x1xf32>
    %230 = math.exp %229 : vector<8x1xf32>
    %cst_79 = arith.constant 1.000000e+00 : f32
    %231 = vector.broadcast %cst_79 : f32 to vector<8x1xf32>
    %232 = arith.addf %231, %230 : vector<8x1xf32>
    %233 = arith.divf %231, %232 : vector<8x1xf32>
    %234 = vector.shape_cast %233 : vector<8x1xf32> to vector<8x1xf32>
    %235 = vector.broadcast %234 : vector<8x1xf32> to vector<8x128xf32>
    %c0_80 = arith.constant 0 : index
    %c0_81 = arith.constant 0 : index
    %236 = vector.load %arg11[%c0_80, %c0_81] : memref<8x128xf32, #tpu.memory_space<vmem>>, vector<8x128xf32>
    tpu.vector_store %arg11[%c0_80, %c0_81], %235 {strides = array<i32>} : memref<8x128xf32, #tpu.memory_space<vmem>>, vector<8x128xf32>,
    %237 = vector.broadcast %171 : f32 to vector<1x128xf32>
    %c0_82 = arith.constant 0 : index
    %c0_83 = arith.constant 0 : index
    %238 = vector.load %arg12[%c0_82, %c0_83] : memref<1x128xf32, #tpu.memory_space<vmem>>, vector<1x128xf32>
    tpu.vector_store %arg12[%c0_82, %c0_83], %237 {strides = array<i32>} : memref<1x128xf32, #tpu.memory_space<vmem>>, vector<1x128xf32>,
    return
  }
  func.func @transform_0(%arg0: i32) -> (i32, i32) {
    %c0_i32 = arith.constant 0 : i32
    %c0_i32_0 = arith.constant 0 : i32
    %c0_i32_1 = arith.constant 0 : i32
    return %c0_i32, %c0_i32_0 : i32, i32
  }
  func.func @transform_1(%arg0: i32) -> (i32, i32) {
    %c0_i32 = arith.constant 0 : i32
    %c0_i32_0 = arith.constant 0 : i32
    %c0_i32_1 = arith.constant 0 : i32
    return %c0_i32, %c0_i32_0 : i32, i32
  }
  func.func @transform_2(%arg0: i32) -> (i32, i32) {
    %c0_i32 = arith.constant 0 : i32
    %c0_i32_0 = arith.constant 0 : i32
    %c0_i32_1 = arith.constant 0 : i32
    return %c0_i32, %c0_i32_0 : i32, i32
  }
  func.func @transform_3(%arg0: i32) -> (i32, i32) {
    %c0_i32 = arith.constant 0 : i32
    %c0_i32_0 = arith.constant 0 : i32
    %c0_i32_1 = arith.constant 0 : i32
    return %c0_i32, %c0_i32_0 : i32, i32
  }
  func.func @transform_4(%arg0: i32) -> (i32, i32) {
    %c0_i32 = arith.constant 0 : i32
    %c0_i32_0 = arith.constant 0 : i32
    %c0_i32_1 = arith.constant 0 : i32
    return %c0_i32, %c0_i32_0 : i32, i32
  }
  func.func @transform_5(%arg0: i32) -> (i32, i32) {
    %c0_i32 = arith.constant 0 : i32
    %c0_i32_0 = arith.constant 0 : i32
    %c0_i32_1 = arith.constant 0 : i32
    return %c0_i32, %c0_i32_0 : i32, i32
  }
  func.func @transform_6(%arg0: i32) -> (i32, i32) {
    %c0_i32 = arith.constant 0 : i32
    %c0_i32_0 = arith.constant 0 : i32
    %c0_i32_1 = arith.constant 0 : i32
    return %c0_i32, %c0_i32_0 : i32, i32
  }
  func.func @transform_7(%arg0: i32) -> (i32, i32) {
    %c0_i32 = arith.constant 0 : i32
    %c0_i32_0 = arith.constant 0 : i32
    %c0_i32_1 = arith.constant 0 : i32
    return %c0_i32, %c0_i32_0 : i32, i32
  }
  func.func @transform_8(%arg0: i32) -> (i32, i32) {
    %c0_i32 = arith.constant 0 : i32
    %c0_i32_0 = arith.constant 0 : i32
    %c0_i32_1 = arith.constant 0 : i32
    return %c0_i32, %c0_i32_0 : i32, i32
  }
  func.func @transform_9(%arg0: i32) -> (i32, i32) {
    %c0_i32 = arith.constant 0 : i32
    %c0_i32_0 = arith.constant 0 : i32
    %c0_i32_1 = arith.constant 0 : i32
    return %c0_i32, %c0_i32_0 : i32, i32
  }
  func.func @transform_10(%arg0: i32) -> (i32, i32) {
    %c0_i32 = arith.constant 0 : i32
    %c0_i32_0 = arith.constant 0 : i32
    %c0_i32_1 = arith.constant 0 : i32
    return %c0_i32, %c0_i32_0 : i32, i32
  }
  func.func @transform_11(%arg0: i32) -> (i32, i32) {
    %c0_i32 = arith.constant 0 : i32
    %c0_i32_0 = arith.constant 0 : i32
    %c0_i32_1 = arith.constant 0 : i32
    return %c0_i32, %c0_i32_0 : i32, i32
  }
}

</mosaic_0001>

<llo_original>
// kernel: ckan_forward.1
$region0: #{ckan_forward.1}
  #allocation0 [shape = 'u32[]', space=smem, size = 0x4, offset = 0x4, fixed_abs, tag = 'smem constant byte address 0x4 - core index']
  #allocation1 [shape = 'u32[144,128]{1,0:T(1,128)}', space=vmem, size = 0x12000, scoped, tag = 'internal scratch']
  %s0 = inlined_call_operand.vmem [shape: bf16[96,96], index: 0, kind: input, shape index: {}]
  %s1 = inlined_call_operand.vmem [shape: bf16[96,32], index: 1, kind: input, shape index: {}]
  %s2 = inlined_call_operand.vmem [shape: bf16[256,64], index: 2, kind: input, shape index: {}]
  %s3 = inlined_call_operand.vmem [shape: bf16[256,32], index: 3, kind: input, shape index: {}]
  %s4 = inlined_call_operand.vmem [shape: bf16[64,32], index: 4, kind: input, shape index: {}]
  %s5 = inlined_call_operand.vmem [shape: bf16[32,32], index: 5, kind: input, shape index: {}]
  %s6 = inlined_call_operand.vmem [shape: bf16[32,32], index: 6, kind: input, shape index: {}]
  %s7 = inlined_call_operand.vmem [shape: bf16[16,32], index: 7, kind: input, shape index: {}]
  %s8 = inlined_call_operand.vmem [shape: f32[8,32], index: 8, kind: input, shape index: {}]
  %s9 = inlined_call_operand.vmem [shape: f32[8,32], index: 9, kind: input, shape index: {}]
  %s10 = inlined_call_operand.vmem [shape: f32[8,128], index: 10, kind: output, shape index: {0}]
  %s11 = inlined_call_operand.hbm [shape: f32[1,128], index: 11, kind: output, shape index: {1}]
  %12 = xla_tuple %s10, %s11
  %s13 = sld [smem:[#allocation0]]
  $region58: #{ckan_forward.1} parent=0
    _
  %s15 = ssub.s32 1, %s13
  %s16 = scalar_select 0, %s15, %s13
  $region1: #{ckan_forward.1} parent=0
    #allocation2 [shape = 'u8[512]{0}', space=vmem, size = 0x400, scoped, tag = 'output window, operand 1, single buffered']
    #allocation3 [shape = 's32[1]{0}', space=sflag, size = 0x4, scoped, tag = 'scoped memory for ckan_forward.1']
    %17 = vsyncpa [#allocation3], 0
    // Predicated region
    $region2: #{ckan_forward.1} parent=1 // pred_check
      _
    $region3: #{ckan_forward.1} parent=1 // pred_check_branch
      %19 = sbr.rel (0) target = $region5
    $region4: #{ckan_forward.1} parent=1 // pred_region
      _
    $region5: #{ckan_forward.1} parent=1 // pred_fallthru
      _
    // Predicated region
    $region6: #{ckan_forward.1} parent=1 // pred_check
      _
    $region7: #{ckan_forward.1} parent=1 // pred_check_branch
      %21 = sbr.rel (0) target = $region9
    $region8: #{ckan_forward.1} parent=1 // pred_region
      _
    $region9: #{ckan_forward.1} parent=1 // pred_fallthru
      _
    // Predicated region
    $region10: #{ckan_forward.1} parent=1 // pred_check
      _
    $region11: #{ckan_forward.1} parent=1 // pred_check_branch
      %23 = sbr.rel (0) target = $region13
    $region12: #{ckan_forward.1} parent=1 // pred_region
      _
    $region13: #{ckan_forward.1} parent=1 // pred_fallthru
      _
    // Predicated region
    $region14: #{ckan_forward.1} parent=1 // pred_check
      _
    $region15: #{ckan_forward.1} parent=1 // pred_check_branch
      %25 = sbr.rel (0) target = $region17
    $region16: #{ckan_forward.1} parent=1 // pred_region
      _
    $region17: #{ckan_forward.1} parent=1 // pred_fallthru
      _
    // Predicated region
    $region18: #{ckan_forward.1} parent=1 // pred_check
      _
    $region19: #{ckan_forward.1} parent=1 // pred_check_branch
      %27 = sbr.rel (0) target = $region21
    $region20: #{ckan_forward.1} parent=1 // pred_region
      _
    $region21: #{ckan_forward.1} parent=1 // pred_fallthru
      _
    // Predicated region
    $region22: #{ckan_forward.1} parent=1 // pred_check
      _
    $region23: #{ckan_forward.1} parent=1 // pred_check_branch
      %29 = sbr.rel (0) target = $region25
    $region24: #{ckan_forward.1} parent=1 // pred_region
      _
    $region25: #{ckan_forward.1} parent=1 // pred_fallthru
      _
    // Predicated region
    $region26: #{ckan_forward.1} parent=1 // pred_check
      _
    $region27: #{ckan_forward.1} parent=1 // pred_check_branch
      %31 = sbr.rel (0) target = $region29
    $region28: #{ckan_forward.1} parent=1 // pred_region
      _
    $region29: #{ckan_forward.1} parent=1 // pred_fallthru
      _
    // Predicated region
    $region30: #{ckan_forward.1} parent=1 // pred_check
      _
    $region31: #{ckan_forward.1} parent=1 // pred_check_branch
      %33 = sbr.rel (0) target = $region33
    $region32: #{ckan_forward.1} parent=1 // pred_region
      _
    $region33: #{ckan_forward.1} parent=1 // pred_fallthru
      _
    // Predicated region
    $region34: #{ckan_forward.1} parent=1 // pred_check
      _
    $region35: #{ckan_forward.1} parent=1 // pred_check_branch
      %35 = sbr.rel (0) target = $region37
    $region36: #{ckan_forward.1} parent=1 // pred_region
      _
    $region37: #{ckan_forward.1} parent=1 // pred_fallthru
      _
    // Predicated region
    $region38: #{ckan_forward.1} parent=1 // pred_check
      _
    $region39: #{ckan_forward.1} parent=1 // pred_check_branch
      %37 = sbr.rel (0) target = $region41
    $region40: #{ckan_forward.1} parent=1 // pred_region
      _
    $region41: #{ckan_forward.1} parent=1 // pred_fallthru
      _
    %v39 = vld [vmem:[%s0] sm:$0xf]
    %v40 = vld [vmem:[%s0 + $0x4] sm:$0xf]
    %v41 = vld [vmem:[%s0 + $0x8] sm:$0xf]
    %v42 = vld [vmem:[%s0 + $0xc] sm:$0xf]
    %v43 = vld [vmem:[%s0 + $0x10] sm:$0xf]
    %v44 = vld [vmem:[%s0 + $0x14] sm:$0xf]
    %v45 = vld [vmem:[%s0 + $0x18] sm:$0xf]
    %v46 = vld [vmem:[%s0 + $0x1c] sm:$0xf]
    %v47 = vld [vmem:[%s0 + $0x20] sm:$0xf]
    %v48 = vld [vmem:[%s0 + $0x24] sm:$0xf]
    %v49 = vld [vmem:[%s0 + $0x28] sm:$0xf]
    %v50 = vld [vmem:[%s0 + $0x2c] sm:$0xf]
    %v51 = vld [vmem:[%s1] sm:$0xf]
    %v52 = vld [vmem:[%s1 + $0x4] sm:$0xf]
    %v53 = vld [vmem:[%s1 + $0x8] sm:$0xf]
    %v54 = vld [vmem:[%s1 + $0xc] sm:$0xf]
    %v55 = vld [vmem:[%s1 + $0x10] sm:$0xf]
    %v56 = vld [vmem:[%s1 + $0x14] sm:$0xf]
    %v57 = vld [vmem:[%s1 + $0x18] sm:$0xf]
    %v58 = vld [vmem:[%s1 + $0x1c] sm:$0xf]
    %v59 = vld [vmem:[%s1 + $0x20] sm:$0xf]
    %v60 = vld [vmem:[%s1 + $0x24] sm:$0xf]
    %v61 = vld [vmem:[%s1 + $0x28] sm:$0xf]
    %v62 = vld [vmem:[%s1 + $0x2c] sm:$0xf]
    %v63 = vunpack.c.l.bf16 %v51
    %v64 = vunpack.c.l.bf16 %v52
    %v65 = vunpack.c.l.bf16 %v53
    %v66 = vunpack.c.l.bf16 %v54
    %v67 = vunpack.c.l.bf16 %v55
    %v68 = vunpack.c.l.bf16 %v56
    %v69 = vunpack.c.l.bf16 %v57
    %v70 = vunpack.c.l.bf16 %v58
    %v71 = vunpack.c.l.bf16 %v59
    %v72 = vunpack.c.l.bf16 %v60
    %v73 = vunpack.c.l.bf16 %v61
    %v74 = vunpack.c.l.bf16 %v62
    %v87 = vunpack.c.l.b16 %v39
    %v88 = vunpack.c.l.b16 %v40
    %v89 = vunpack.c.l.b16 %v41
    %v90 = vunpack.c.l.b16 %v42
    %v91 = vunpack.c.l.b16 %v43
    %v92 = vunpack.c.l.b16 %v44
    %v93 = vunpack.c.l.b16 %v45
    %v94 = vunpack.c.l.b16 %v46
    %v95 = vunpack.c.l.b16 %v47
    %v96 = vunpack.c.l.b16 %v48
    %v97 = vunpack.c.l.b16 %v49
    %v98 = vunpack.c.l.b16 %v50
    %v99 = vpack.c.b16 %v88, %v87
    %v100 = vpack.c.b16 %v90, %v89
    %v101 = vpack.c.b16 %v92, %v91
    %v102 = vpack.c.b16 %v94, %v93
    %v103 = vpack.c.b16 %v96, %v95
    %v104 = vpack.c.b16 %v98, %v97
    %v117 = vunpack.c.l.b16 %v51
    %v118 = vunpack.c.l.b16 %v52
    %v119 = vunpack.c.l.b16 %v53
    %v120 = vunpack.c.l.b16 %v54
    %v121 = vunpack.c.l.b16 %v55
    %v122 = vunpack.c.l.b16 %v56
    %v123 = vunpack.c.l.b16 %v57
    %v124 = vunpack.c.l.b16 %v58
    %v125 = vunpack.c.l.b16 %v59
    %v126 = vunpack.c.l.b16 %v60
    %v127 = vunpack.c.l.b16 %v61
    %v128 = vunpack.c.l.b16 %v62
    %v129 = vpack.c.b16 %v118, %v117
    %v130 = vpack.c.b16 %v120, %v119
    %v131 = vpack.c.b16 %v122, %v121
    %v132 = vpack.c.b16 %v124, %v123
    %v133 = vpack.c.b16 %v126, %v125
    %v134 = vpack.c.b16 %v128, %v127
    %vm141 = vcmask 785408
    %v143 = vsel %vm141, %v99, 0
    %v146 = vsel %vm141, %v100, 0
    %v149 = vsel %vm141, %v101, 0
    %v152 = vsel %vm141, %v102, 0
    %v155 = vsel %vm141, %v103, 0
    %v158 = vsel %vm141, %v104, 0
    %160 = vmatprep.subr.bf16.mxu0 0
    %161 = vmatpush1.bf16.msra.mxu0 %v129
    %162 = vmatprep.subr.bf16.mxu0 0
    %163 = vmatpush1.bf16.msra.mxu0 %v130
    %164 = vmatprep.subr.bf16.mxu0 0
    %165 = vmatpush1.bf16.msra.mxu0 %v131
    %166 = vmatprep.subr.bf16.mxu0 0
    %167 = vmatpush1.bf16.msra.mxu0 %v132
    %168 = vmatprep.subr.bf16.mxu0 0
    %169 = vmatpush1.bf16.msra.mxu0 %v133
    %170 = vmatprep.subr.bf16.mxu0 0
    %171 = vmatpush1.bf16.msra.mxu0 %v134
    %172 = vmatprep.subr.bf16.mxu0 0
    %173 = vmatpush1.bf16.msra.mxu0 0
    %174 = vmatprep.subr.bf16.mxu0 0
    %175 = vmatpush1.bf16.msra.mxu0 0
    %176 = vmatprep.subr.bf16.mxu0 0
    %177 = vmatpush1.bf16.msra.mxu0 0
    %178 = vmatprep.subr.bf16.mxu0 0
    %179 = vmatpush1.bf16.msra.mxu0 0
    %180 = vmatprep.subr.bf16.mxu0 0
    %181 = vmatpush1.bf16.msra.mxu0 0
    %182 = vmatprep.subr.bf16.mxu0 0
    %183 = vmatpush1.bf16.msra.mxu0 0
    %184 = vmatprep.subr.bf16.mxu0 0
    %185 = vmatpush1.bf16.msra.mxu0 0
    %186 = vmatprep.subr.bf16.mxu0 0
    %187 = vmatpush1.bf16.msra.mxu0 0
    %188 = vmatprep.subr.bf16.mxu0 0
    %189 = vmatpush1.bf16.msra.mxu0 0
    %190 = vmatprep.subr.bf16.mxu0 0
    %191 = vmatpush1.bf16.msra.mxu0 0
    %192 = vmatprep.mubr.bf16.mxu0 0
    %193 = vmatmul.mubr.bf16.gmra.mrb[0].mxu0 %v143
    %v194 = vpop.f32.mrb[0].mxu0
    %v195 = vadd.f32 0.0, %v194
    %v196 = vpop.f32.mrb[0].mxu0
    %v197 = vpop.f32.mrb[0].mxu0
    %v198 = vadd.f32 0.0, %v197
    %v199 = vpop.f32.mrb[0].mxu0
    %200 = vmatprep.mubr.bf16.mxu0 0
    %201 = vmatmul.mubr.bf16.gmra.mrb[0].mxu0 %v146
    %v202 = vpop.f32.mrb[0].mxu0
    %v203 = vadd.f32 0.0, %v202
    %v204 = vpop.f32.mrb[0].mxu0
    %v205 = vpop.f32.mrb[0].mxu0
    %v206 = vadd.f32 0.0, %v205
    %v207 = vpop.f32.mrb[0].mxu0
    %208 = vmatprep.mubr.bf16.mxu0 0
    %209 = vmatmul.mubr.bf16.gmra.mrb[0].mxu0 %v149
    %v210 = vpop.f32.mrb[0].mxu0
    %v211 = vadd.f32 0.0, %v210
    %v212 = vpop.f32.mrb[0].mxu0
    %v213 = vpop.f32.mrb[0].mxu0
    %v214 = vadd.f32 0.0, %v213
    %v215 = vpop.f32.mrb[0].mxu0
    %216 = vmatprep.mubr.bf16.mxu0 0
    %217 = vmatmul.mubr.bf16.gmra.mrb[0].mxu0 %v152
    %v218 = vpop.f32.mrb[0].mxu0
    %v219 = vadd.f32 0.0, %v218
    %v220 = vpop.f32.mrb[0].mxu0
    %v221 = vpop.f32.mrb[0].mxu0
    %v222 = vadd.f32 0.0, %v221
    %v223 = vpop.f32.mrb[0].mxu0
    %224 = vmatprep.mubr.bf16.mxu0 0
    %225 = vmatmul.mubr.bf16.gmra.mrb[0].mxu0 %v155
    %v226 = vpop.f32.mrb[0].mxu0
    %v227 = vadd.f32 0.0, %v226
    %v228 = vpop.f32.mrb[0].mxu0
    %v229 = vpop.f32.mrb[0].mxu0
    %v230 = vadd.f32 0.0, %v229
    %v231 = vpop.f32.mrb[0].mxu0
    %232 = vmatprep.mubr.bf16.mxu0 0
    %233 = vmatmul.mubr.bf16.gmra.mrb[0].mxu0 %v158
    %v234 = vpop.f32.mrb[0].mxu0
    %v235 = vadd.f32 0.0, %v234
    %v236 = vpop.f32.mrb[0].mxu0
    %v237 = vpop.f32.mrb[0].mxu0
    %v238 = vadd.f32 0.0, %v237
    %v239 = vpop.f32.mrb[0].mxu0
    %240 = vdwg.mxu0
    %v241 = vmul.f32 %v195, %v195
    %v242 = vmul.f32 %v198, %v198
    %v243 = vmul.f32 %v203, %v203
    %v244 = vmul.f32 %v206, %v206
    %v245 = vmul.f32 %v211, %v211
    %v246 = vmul.f32 %v214, %v214
    %v247 = vmul.f32 %v219, %v219
    %v248 = vmul.f32 %v222, %v222
    %vm249 = vcmask 261120
    %v250 = vsel %vm249, %v241, 0.0
    %251 = vadd.xlane.f32.xlu0 %v250
    %v252 = vpop.xlane.xlu0 %251
    %v253 = vsel %vm249, %v242, 0.0
    %254 = vadd.xlane.f32.xlu0 %v253
    %v255 = vpop.xlane.xlu0 %254
    %v256 = vsel %vm249, %v243, 0.0
    %257 = vadd.xlane.f32.xlu0 %v256
    %v258 = vpop.xlane.xlu0 %257
    %v259 = vsel %vm249, %v244, 0.0
    %260 = vadd.xlane.f32.xlu0 %v259
    %v261 = vpop.xlane.xlu0 %260
    %v262 = vsel %vm249, %v245, 0.0
    %263 = vadd.xlane.f32.xlu0 %v262
    %v264 = vpop.xlane.xlu0 %263
    %v265 = vsel %vm249, %v246, 0.0
    %266 = vadd.xlane.f32.xlu0 %v265
    %v267 = vpop.xlane.xlu0 %266
    %v268 = vsel %vm249, %v247, 0.0
    %269 = vadd.xlane.f32.xlu0 %v268
    %v270 = vpop.xlane.xlu0 %269
    %v271 = vsel %vm249, %v248, 0.0
    %272 = vadd.xlane.f32.xlu0 %v271
    %v273 = vpop.xlane.xlu0 %272
    %v274 = vmax.f32 %v252, 1e-24
    %v275 = vmax.f32 %v255, 1e-24
    %v276 = vmax.f32 %v258, 1e-24
    %v277 = vmax.f32 %v261, 1e-24
    %v278 = vmax.f32 %v264, 1e-24
    %v279 = vmax.f32 %v267, 1e-24
    %v280 = vmax.f32 %v270, 1e-24
    %v281 = vmax.f32 %v273, 1e-24
    %v282 = vrsqrt.pop %v274
    %v283 = vrsqrt.pop %v275
    %v284 = vrsqrt.pop %v276
    %v285 = vrsqrt.pop %v277
    %v286 = vrsqrt.pop %v278
    %v287 = vrsqrt.pop %v279
    %v288 = vrsqrt.pop %v280
    %v289 = vrsqrt.pop %v281
    %v290 = vmul.f32 %v195, %v282
    %v291 = vmul.f32 %v198, %v283
    %v292 = vmul.f32 %v203, %v284
    %v293 = vmul.f32 %v206, %v285
    %v294 = vmul.f32 %v211, %v286
    %v295 = vmul.f32 %v214, %v287
    %v296 = vmul.f32 %v219, %v288
    %v297 = vmul.f32 %v222, %v289
    %v298 = vadd.f32 %v63, %v290
    %v299 = vadd.f32 %v64, %v291
    %v300 = vadd.f32 %v65, %v292
    %v301 = vadd.f32 %v66, %v293
    %v302 = vadd.f32 %v67, %v294
    %v303 = vadd.f32 %v68, %v295
    %v304 = vadd.f32 %v69, %v296
    %v305 = vadd.f32 %v70, %v297
    %v306 = vadd.f32 %v71, %v227
    %v307 = vadd.f32 %v72, %v230
    %v308 = vadd.f32 %v73, %v235
    %v309 = vadd.f32 %v74, %v238
    %v310 = vpack.c.bf16 %v198, %v195
    %v311 = vpack.c.bf16 %v206, %v203
    %v312 = vpack.c.bf16 %v214, %v211
    %v313 = vpack.c.bf16 %v222, %v219
    %v314 = vpack.c.bf16 %v230, %v227
    %v315 = vpack.c.bf16 %v238, %v235
    %316 = vmatprep.subr.bf16.mxu0 0
    %317 = vmatpush1.bf16.msra.mxu0 %v310
    %318 = vmatprep.subr.bf16.mxu0 0
    %319 = vmatpush1.bf16.msra.mxu0 %v311
    %320 = vmatprep.subr.bf16.mxu0 0
    %321 = vmatpush1.bf16.msra.mxu0 %v312
    %322 = vmatprep.subr.bf16.mxu0 0
    %323 = vmatpush1.bf16.msra.mxu0 %v313
    %324 = vmatprep.subr.bf16.mxu0 0
    %325 = vmatpush1.bf16.msra.mxu0 %v314
    %326 = vmatprep.subr.bf16.mxu0 0
    %327 = vmatpush1.bf16.msra.mxu0 %v315
    %328 = vmatprep.subr.bf16.mxu0 0
    %329 = vmatpush1.bf16.msra.mxu0 0
    %330 = vmatprep.subr.bf16.mxu0 0
    %331 = vmatpush1.bf16.msra.mxu0 0
    %332 = vmatprep.subr.bf16.mxu0 0
    %333 = vmatpush1.bf16.msra.mxu0 0
    %334 = vmatprep.subr.bf16.mxu0 0
    %335 = vmatpush1.bf16.msra.mxu0 0
    %336 = vmatprep.subr.bf16.mxu0 0
    %337 = vmatpush1.bf16.msra.mxu0 0
    %338 = vmatprep.subr.bf16.mxu0 0
    %339 = vmatpush1.bf16.msra.mxu0 0
    %340 = vmatprep.subr.bf16.mxu0 0
    %341 = vmatpush1.bf16.msra.mxu0 0
    %342 = vmatprep.subr.bf16.mxu0 0
    %343 = vmatpush1.bf16.msra.mxu0 0
    %344 = vmatprep.subr.bf16.mxu0 0
    %345 = vmatpush1.bf16.msra.mxu0 0
    %346 = vmatprep.subr.bf16.mxu0 0
    %347 = vmatpush1.bf16.msra.mxu0 0
    %348 = vmatprep.mubr.bf16.mxu0 0
    %349 = vmatmul.mubr.bf16.gmra.mrb[0].mxu0 %v143
    %v350 = vpop.f32.mrb[0].mxu0
    %v351 = vadd.f32 0.0, %v350
    %v352 = vpop.f32.mrb[0].mxu0
    %v353 = vpop.f32.mrb[0].mxu0
    %v354 = vadd.f32 0.0, %v353
    %v355 = vpop.f32.mrb[0].mxu0
    %356 = vmatprep.mubr.bf16.mxu0 0
    %357 = vmatmul.mubr.bf16.gmra.mrb[0].mxu0 %v146
    %v358 = vpop.f32.mrb[0].mxu0
    %v359 = vadd.f32 0.0, %v358
    %v360 = vpop.f32.mrb[0].mxu0
    %v361 = vpop.f32.mrb[0].mxu0
    %v362 = vadd.f32 0.0, %v361
    %v363 = vpop.f32.mrb[0].mxu0
    %364 = vmatprep.mubr.bf16.mxu0 0
    %365 = vmatmul.mubr.bf16.gmra.mrb[0].mxu0 %v149
    %v366 = vpop.f32.mrb[0].mxu0
    %v367 = vadd.f32 0.0, %v366
    %v368 = vpop.f32.mrb[0].mxu0
    %v369 = vpop.f32.mrb[0].mxu0
    %v370 = vadd.f32 0.0, %v369
    %v371 = vpop.f32.mrb[0].mxu0
    %372 = vmatprep.mubr.bf16.mxu0 0
    %373 = vmatmul.mubr.bf16.gmra.mrb[0].mxu0 %v152
    %v374 = vpop.f32.mrb[0].mxu0
    %v375 = vadd.f32 0.0, %v374
    %v376 = vpop.f32.mrb[0].mxu0
    %v377 = vpop.f32.mrb[0].mxu0
    %v378 = vadd.f32 0.0, %v377
    %v379 = vpop.f32.mrb[0].mxu0
    %380 = vmatprep.mubr.bf16.mxu0 0
    %381 = vmatmul.mubr.bf16.gmra.mrb[0].mxu0 %v155
    %v382 = vpop.f32.mrb[0].mxu0
    %v383 = vadd.f32 0.0, %v382
    %v384 = vpop.f32.mrb[0].mxu0
    %v385 = vpop.f32.mrb[0].mxu0
    %v386 = vadd.f32 0.0, %v385
    %v387 = vpop.f32.mrb[0].mxu0
    %388 = vmatprep.mubr.bf16.mxu0 0
    %389 = vmatmul.mubr.bf16.gmra.mrb[0].mxu0 %v158
    %v390 = vpop.f32.mrb[0].mxu0
    %v391 = vadd.f32 0.0, %v390
    %v392 = vpop.f32.mrb[0].mxu0
    %v393 = vpop.f32.mrb[0].mxu0
    %v394 = vadd.f32 0.0, %v393
    %v395 = vpop.f32.mrb[0].mxu0
    %396 = vdwg.mxu0
    %v397 = vmul.f32 %v351, %v351
    %v398 = vmul.f32 %v354, %v354
    %v399 = vmul.f32 %v359, %v359
    %v400 = vmul.f32 %v362, %v362
    %v401 = vmul.f32 %v367, %v367
    %v402 = vmul.f32 %v370, %v370
    %v403 = vmul.f32 %v375, %v375
    %v404 = vmul.f32 %v378, %v378
    %v405 = vsel %vm249, %v397, 0.0
    %406 = vadd.xlane.f32.xlu0 %v405
    %v407 = vpop.xlane.xlu0 %406
    %v408 = vsel %vm249, %v398, 0.0
    %409 = vadd.xlane.f32.xlu0 %v408
    %v410 = vpop.xlane.xlu0 %409
    %v411 = vsel %vm249, %v399, 0.0
    %412 = vadd.xlane.f32.xlu0 %v411
    %v413 = vpop.xlane.xlu0 %412
    %v414 = vsel %vm249, %v400, 0.0
    %415 = vadd.xlane.f32.xlu0 %v414
    %v416 = vpop.xlane.xlu0 %415
    %v417 = vsel %vm249, %v401, 0.0
    %418 = vadd.xlane.f32.xlu0 %v417
    %v419 = vpop.xlane.xlu0 %418
    %v420 = vsel %vm249, %v402, 0.0
    %421 = vadd.xlane.f32.xlu0 %v420
    %v422 = vpop.xlane.xlu0 %421
    %v423 = vsel %vm249, %v403, 0.0
    %424 = vadd.xlane.f32.xlu0 %v423
    %v425 = vpop.xlane.xlu0 %424
    %v426 = vsel %vm249, %v404, 0.0
    %427 = vadd.xlane.f32.xlu0 %v426
    %v428 = vpop.xlane.xlu0 %427
    %v429 = vmax.f32 %v407, 1e-24
    %v430 = vmax.f32 %v410, 1e-24
    %v431 = vmax.f32 %v413, 1e-24
    %v432 = vmax.f32 %v416, 1e-24
    %v433 = vmax.f32 %v419, 1e-24
    %v434 = vmax.f32 %v422, 1e-24
    %v435 = vmax.f32 %v425, 1e-24
    %v436 = vmax.f32 %v428, 1e-24
    %v437 = vrsqrt.pop %v429
    %v438 = vrsqrt.pop %v430
    %v439 = vrsqrt.pop %v431
    %v440 = vrsqrt.pop %v432
    %v441 = vrsqrt.pop %v433
    %v442 = vrsqrt.pop %v434
    %v443 = vrsqrt.pop %v435
    %v444 = vrsqrt.pop %v436
    %v445 = vmul.f32 %v351, %v437
    %v446 = vmul.f32 %v354, %v438
    %v447 = vmul.f32 %v359, %v439
    %v448 = vmul.f32 %v362, %v440
    %v449 = vmul.f32 %v367, %v441
    %v450 = vmul.f32 %v370, %v442
    %v451 = vmul.f32 %v375, %v443
    %v452 = vmul.f32 %v378, %v444
    %v453 = vadd.f32 %v298, %v445
    %v454 = vadd.f32 %v299, %v446
    %v455 = vadd.f32 %v300, %v447
    %v456 = vadd.f32 %v301, %v448
    %v457 = vadd.f32 %v302, %v449
    %v458 = vadd.f32 %v303, %v450
    %v459 = vadd.f32 %v304, %v451
    %v460 = vadd.f32 %v305, %v452
    %v461 = vadd.f32 %v306, %v383
    %v462 = vadd.f32 %v307, %v386
    %v463 = vadd.f32 %v308, %v391
    %v464 = vadd.f32 %v309, %v394
    %v465 = vpack.c.bf16 %v354, %v351
    %v466 = vpack.c.bf16 %v362, %v359
    %v467 = vpack.c.bf16 %v370, %v367
    %v468 = vpack.c.bf16 %v378, %v375
    %v469 = vpack.c.bf16 %v386, %v383
    %v470 = vpack.c.bf16 %v394, %v391
    %471 = vmatprep.subr.bf16.mxu0 0
    %472 = vmatpush1.bf16.msra.mxu0 %v465
    %473 = vmatprep.subr.bf16.mxu0 0
    %474 = vmatpush1.bf16.msra.mxu0 %v466
    %475 = vmatprep.subr.bf16.mxu0 0
    %476 = vmatpush1.bf16.msra.mxu0 %v467
    %477 = vmatprep.subr.bf16.mxu0 0
    %478 = vmatpush1.bf16.msra.mxu0 %v468
    %479 = vmatprep.subr.bf16.mxu0 0
    %480 = vmatpush1.bf16.msra.mxu0 %v469
    %481 = vmatprep.subr.bf16.mxu0 0
    %482 = vmatpush1.bf16.msra.mxu0 %v470
    %483 = vmatprep.subr.bf16.mxu0 0
    %484 = vmatpush1.bf16.msra.mxu0 0
    %485 = vmatprep.subr.bf16.mxu0 0
    %486 = vmatpush1.bf16.msra.mxu0 0
    %487 = vmatprep.subr.bf16.mxu0 0
    %488 = vmatpush1.bf16.msra.mxu0 0
    %489 = vmatprep.subr.bf16.mxu0 0
    %490 = vmatpush1.bf16.msra.mxu0 0
    %491 = vmatprep.subr.bf16.mxu0 0
    %492 = vmatpush1.bf16.msra.mxu0 0
    %493 = vmatprep.subr.bf16.mxu0 0
    %494 = vmatpush1.bf16.msra.mxu0 0
    %495 = vmatprep.subr.bf16.mxu0 0
    %496 = vmatpush1.bf16.msra.mxu0 0
    %497 = vmatprep.subr.bf16.mxu0 0
    %498 = vmatpush1.bf16.msra.mxu0 0
    %499 = vmatprep.subr.bf16.mxu0 0
    %500 = vmatpush1.bf16.msra.mxu0 0
    %501 = vmatprep.subr.bf16.mxu0 0
    %502 = vmatpush1.bf16.msra.mxu0 0
    %503 = vmatprep.mubr.bf16.mxu0 0
    %504 = vmatmul.mubr.bf16.gmra.mrb[0].mxu0 %v143
    %v505 = vpop.f32.mrb[0].mxu0
    %v506 = vpop.f32.mrb[0].mxu0
    %v507 = vpop.f32.mrb[0].mxu0
    %v508 = vpop.f32.mrb[0].mxu0
    %509 = vmatprep.mubr.bf16.mxu0 0
    %510 = vmatmul.mubr.bf16.gmra.mrb[0].mxu0 %v146
    %v511 = vpop.f32.mrb[0].mxu0
    %v512 = vpop.f32.mrb[0].mxu0
    %v513 = vpop.f32.mrb[0].mxu0
    %v514 = vpop.f32.mrb[0].mxu0
    %515 = vmatprep.mubr.bf16.mxu0 0
    %516 = vmatmul.mubr.bf16.gmra.mrb[0].mxu0 %v149
    %v517 = vpop.f32.mrb[0].mxu0
    %v518 = vpop.f32.mrb[0].mxu0
    %v519 = vpop.f32.mrb[0].mxu0
    %v520 = vpop.f32.mrb[0].mxu0
    %521 = vmatprep.mubr.bf16.mxu0 0
    %522 = vmatmul.mubr.bf16.gmra.mrb[0].mxu0 %v152
    %v523 = vpop.f32.mrb[0].mxu0
    %v524 = vpop.f32.mrb[0].mxu0
    %v525 = vpop.f32.mrb[0].mxu0
    %v526 = vpop.f32.mrb[0].mxu0
    %527 = vmatprep.mubr.bf16.mxu0 0
    %528 = vmatmul.mubr.bf16.gmra.mrb[0].mxu0 %v155
    %v529 = vpop.f32.mrb[0].mxu0
    %v530 = vadd.f32 0.0, %v529
    %v531 = vpop.f32.mrb[0].mxu0
    %v532 = vpop.f32.mrb[0].mxu0
    %v533 = vadd.f32 0.0, %v532
    %v534 = vpop.f32.mrb[0].mxu0
    %535 = vmatprep.mubr.bf16.mxu0 0
    %536 = vmatmul.mubr.bf16.gmra.mrb[0].mxu0 %v158
    %v537 = vpop.f32.mrb[0].mxu0
    %v538 = vadd.f32 0.0, %v537
    %v539 = vpop.f32.mrb[0].mxu0
    %v540 = vpop.f32.mrb[0].mxu0
    %v541 = vadd.f32 0.0, %v540
    %v542 = vpop.f32.mrb[0].mxu0
    %543 = vdwg.mxu0
    %v544 = vadd.f32 %v461, %v530
    %v545 = vadd.f32 %v462, %v533
    %v546 = vadd.f32 %v463, %v538
    %v547 = vadd.f32 %v464, %v541
    %v548 = vmul.f32 %v453, %v453
    %v549 = vmul.f32 %v454, %v454
    %v550 = vsel %vm249, %v548, 0.0
    %551 = vadd.xlane.f32.xlu0 %v550
    %v552 = vpop.xlane.xlu0 %551
    %v553 = vsel %vm249, %v549, 0.0
    %554 = vadd.xlane.f32.xlu0 %v553
    %v555 = vpop.xlane.xlu0 %554
    %v556 = vmax.f32 %v552, 1e-24
    %v557 = vmax.f32 %v555, 1e-24
    %v558 = vrsqrt.pop %v556
    %v559 = vrsqrt.pop %v557
    %v560 = vmul.f32 %v453, %v558
    %v561 = vmul.f32 %v454, %v559
    %v562 = vmul.f32 %v457, %v457
    %v563 = vmul.f32 %v458, %v458
    %v564 = vsel %vm249, %v562, 0.0
    %565 = vadd.xlane.f32.xlu0 %v564
    %v566 = vpop.xlane.xlu0 %565
    %v567 = vsel %vm249, %v563, 0.0
    %568 = vadd.xlane.f32.xlu0 %v567
    %v569 = vpop.xlane.xlu0 %568
    %v570 = vmax.f32 %v566, 1e-24
    %v571 = vmax.f32 %v569, 1e-24
    %v572 = vrsqrt.pop %v570
    %v573 = vrsqrt.pop %v571
    %v574 = vmul.f32 %v457, %v572
    %v575 = vmul.f32 %v458, %v573
    %v576 = vmul.f32 %v560, %v574
    %v577 = vmul.f32 %v561, %v575
    %v578 = vsel %vm249, %v576, 0.0
    %579 = vadd.xlane.f32.xlu0 %v578
    %v580 = vpop.xlane.xlu0 %579
    %v581 = vsel %vm249, %v577, 0.0
    %582 = vadd.xlane.f32.xlu0 %v581
    %v583 = vpop.xlane.xlu0 %582
    %v584 = vrcp.pop 0.2
    %v585 = vmul.f32 %v580, %v584
    %v586 = vmul.f32 %v583, %v584
    %v588 = vsel %vm249, %v560, 0
    %v591 = vsel %vm249, %v561, 0
    %v594 = vsel %vm249, %v574, 0
    %v597 = vsel %vm249, %v575, 0
    %599 = vmatprep.subr.mxu0 0.0
    %600 = vmatpush1.xpose.msra.mxu0 %v594
    %601 = vmatprep.subr.mxu0 0.0
    %602 = vmatpush1.xpose.msra.mxu0 %v597
    %603 = vmatprep.subr.mxu0 0.0
    %604 = vmatpush1.xpose.msra.mxu0 0.0
    %605 = vmatprep.subr.mxu0 0.0
    %606 = vmatpush1.xpose.msra.mxu0 0.0
    %607 = vmatprep.subr.mxu0 0.0
    %608 = vmatpush1.xpose.msra.mxu0 0.0
    %609 = vmatprep.subr.mxu0 0.0
    %610 = vmatpush1.xpose.msra.mxu0 0.0
    %611 = vmatprep.subr.mxu0 0.0
    %612 = vmatpush1.xpose.msra.mxu0 0.0
    %613 = vmatprep.subr.mxu0 0.0
    %614 = vmatpush1.xpose.msra.mxu0 0.0
    %615 = vmatprep.subr.mxu0 0.0
    %616 = vmatpush1.xpose.msra.mxu0 0.0
    %617 = vmatprep.subr.mxu0 0.0
    %618 = vmatpush1.xpose.msra.mxu0 0.0
    %619 = vmatprep.subr.mxu0 0.0
    %620 = vmatpush1.xpose.msra.mxu0 0.0
    %621 = vmatprep.subr.mxu0 0.0
    %622 = vmatpush1.xpose.msra.mxu0 0.0
    %623 = vmatprep.subr.mxu0 0.0
    %624 = vmatpush1.xpose.msra.mxu0 0.0
    %625 = vmatprep.subr.mxu0 0.0
    %626 = vmatpush1.xpose.msra.mxu0 0.0
    %627 = vmatprep.subr.mxu0 0.0
    %628 = vmatpush1.xpose.msra.mxu0 0.0
    %629 = vmatprep.subr.mxu0 0.0
    %630 = vmatpush1.xpose.msra.mxu0 0.0
    %631 = vmatprep.subr.mxu0 0.0
    %632 = vmatpush1.xpose.msra.mxu0 0.0
    %633 = vmatprep.subr.mxu0 0.0
    %634 = vmatpush1.xpose.msra.mxu0 0.0
    %635 = vmatprep.subr.mxu0 0.0
    %636 = vmatpush1.xpose.msra.mxu0 0.0
    %637 = vmatprep.subr.mxu0 0.0
    %638 = vmatpush1.xpose.msra.mxu0 0.0
    %639 = vmatprep.subr.mxu0 0.0
    %640 = vmatpush1.xpose.msra.mxu0 0.0
    %641 = vmatprep.subr.mxu0 0.0
    %642 = vmatpush1.xpose.msra.mxu0 0.0
    %643 = vmatprep.subr.mxu0 0.0
    %644 = vmatpush1.xpose.msra.mxu0 0.0
    %645 = vmatprep.subr.mxu0 0.0
    %646 = vmatpush1.xpose.msra.mxu0 0.0
    %647 = vmatprep.subr.mxu0 0.0
    %648 = vmatpush1.xpose.msra.mxu0 0.0
    %649 = vmatprep.subr.mxu0 0.0
    %650 = vmatpush1.xpose.msra.mxu0 0.0
    %651 = vmatprep.subr.mxu0 0.0
    %652 = vmatpush1.xpose.msra.mxu0 0.0
    %653 = vmatprep.subr.mxu0 0.0
    %654 = vmatpush1.xpose.msra.mxu0 0.0
    %655 = vmatprep.subr.mxu0 0.0
    %656 = vmatpush1.xpose.msra.mxu0 0.0
    %657 = vmatprep.subr.mxu0 0.0
    %658 = vmatpush1.xpose.msra.mxu0 0.0
    %659 = vmatprep.subr.mxu0 0.0
    %660 = vmatpush1.xpose.msra.mxu0 0.0
    %661 = vmatprep.subr.mxu0 0.0
    %662 = vmatpush1.xpose.msra.mxu0 0.0
    %663 = vmatprep.mubr.f32.mxu0 0.0
    %664 = vmatmul.mubr.f32.gmra.mrb[0].mxu0 %v588
    %v665 = vpop.f32.mrb[0].mxu0
    %v666 = vadd.f32 0.0, %v665
    %v667 = vpop.f32.mrb[0].mxu0
    %668 = vmatprep.mubr.f32.mxu0 0.0
    %669 = vmatmul.mubr.f32.gmra.mrb[0].mxu0 %v591
    %v670 = vpop.f32.mrb[0].mxu0
    %v671 = vadd.f32 0.0, %v670
    %v672 = vpop.f32.mrb[0].mxu0
    %673 = vdwg.mxu0
    %v674 = vmul.f32 %v666, %v584
    %v675 = vmul.f32 %v671, %v584
    %v676 = vmul.f32 %v674, 1.442695
    %v677 = vpow.pop %v676
    %v678 = vmul.f32 %v675, 1.442695
    %v679 = vpow.pop %v678
    %vm680 = vcmask 130048
    %v681 = vsel %vm680, %v677, 0.0
    %682 = vadd.xlane.f32.xlu0 %v681
    %v683 = vpop.xlane.xlu0 %682
    %v684 = vsel %vm680, %v679, 0.0
    %685 = vadd.xlane.f32.xlu0 %v684
    %v686 = vpop.xlane.xlu0 %685
    %v687 = vlog2.pop %v683
    %v688 = vmul.f32 %v687, 0.6931472
    %v689 = vlog2.pop %v686
    %v690 = vmul.f32 %v689, 0.6931472
    %v691 = vsub.f32 %v688, %v585
    %v692 = vsub.f32 %v690, %v586
    %vm693 = vcmask 7168
    %v694 = vsel %vm693, %v691, 0.0
    %v695 = vsel %vm693, %v692, 0.0
    %v696 = vadd.f32 %v694, %v695
    %697 = vadd.xlane.f32.xlu0 %v696
    %v698 = vpop.xlane.xlu0 %697
    %v699 = vrot.slane %v698, 4
    %v700 = vadd.f32 %v698, %v699
    %v701 = vrot.slane %v700, 2
    %v702 = vadd.f32 %v700, %v701
    %v703 = vrot.slane %v702, 1
    %v704 = vadd.f32 %v702, %v703
    %s705 = vtos %v704
    %v706 = vrcp.pop 16.0
    %s707 = vtos %v706
    %s708 = smul.f32 %s705, %s707
    %v709 = vmul.f32 %v455, %v455
    %v710 = vmul.f32 %v456, %v456
    %v711 = vsel %vm249, %v709, 0.0
    %712 = vadd.xlane.f32.xlu0 %v711
    %v713 = vpop.xlane.xlu0 %712
    %v714 = vsel %vm249, %v710, 0.0
    %715 = vadd.xlane.f32.xlu0 %v714
    %v716 = vpop.xlane.xlu0 %715
    %v717 = vmax.f32 %v713, 1e-24
    %v718 = vmax.f32 %v716, 1e-24
    %v719 = vrsqrt.pop %v717
    %v720 = vrsqrt.pop %v718
    %v721 = vmul.f32 %v455, %v719
    %v722 = vmul.f32 %v456, %v720
    %v723 = vmul.f32 %v459, %v459
    %v724 = vmul.f32 %v460, %v460
    %v725 = vsel %vm249, %v723, 0.0
    %726 = vadd.xlane.f32.xlu0 %v725
    %v727 = vpop.xlane.xlu0 %726
    %v728 = vsel %vm249, %v724, 0.0
    %729 = vadd.xlane.f32.xlu0 %v728
    %v730 = vpop.xlane.xlu0 %729
    %v731 = vmax.f32 %v727, 1e-24
    %v732 = vmax.f32 %v730, 1e-24
    %v733 = vrsqrt.pop %v731
    %v734 = vrsqrt.pop %v732
    %v735 = vmul.f32 %v459, %v733
    %v736 = vmul.f32 %v460, %v734
    %v737 = vmul.f32 %v721, %v735
    %v738 = vmul.f32 %v722, %v736
    %v739 = vsel %vm249, %v737, 0.0
    %740 = vadd.xlane.f32.xlu0 %v739
    %v741 = vpop.xlane.xlu0 %740
    %v742 = vsel %vm249, %v738, 0.0
    %743 = vadd.xlane.f32.xlu0 %v742
    %v744 = vpop.xlane.xlu0 %743
    %v745 = vmul.f32 %v741, %v584
    %v746 = vmul.f32 %v744, %v584
    %v748 = vsel %vm249, %v721, 0
    %v751 = vsel %vm249, %v722, 0
    %v754 = vsel %vm249, %v735, 0
    %v757 = vsel %vm249, %v736, 0
    %759 = vmatprep.subr.mxu0 0.0
    %760 = vmatpush1.xpose.msra.mxu0 %v754
    %761 = vmatprep.subr.mxu0 0.0
    %762 = vmatpush1.xpose.msra.mxu0 %v757
    %763 = vmatprep.subr.mxu0 0.0
    %764 = vmatpush1.xpose.msra.mxu0 0.0
    %765 = vmatprep.subr.mxu0 0.0
    %766 = vmatpush1.xpose.msra.mxu0 0.0
    %767 = vmatprep.subr.mxu0 0.0
    %768 = vmatpush1.xpose.msra.mxu0 0.0
    %769 = vmatprep.subr.mxu0 0.0
    %770 = vmatpush1.xpose.msra.mxu0 0.0
    %771 = vmatprep.subr.mxu0 0.0
    %772 = vmatpush1.xpose.msra.mxu0 0.0
    %773 = vmatprep.subr.mxu0 0.0
    %774 = vmatpush1.xpose.msra.mxu0 0.0
    %775 = vmatprep.subr.mxu0 0.0
    %776 = vmatpush1.xpose.msra.mxu0 0.0
    %777 = vmatprep.subr.mxu0 0.0
    %778 = vmatpush1.xpose.msra.mxu0 0.0
    %779 = vmatprep.subr.mxu0 0.0
    %780 = vmatpush1.xpose.msra.mxu0 0.0
    %781 = vmatprep.subr.mxu0 0.0
    %782 = vmatpush1.xpose.msra.mxu0 0.0
    %783 = vmatprep.subr.mxu0 0.0
    %784 = vmatpush1.xpose.msra.mxu0 0.0
    %785 = vmatprep.subr.mxu0 0.0
    %786 = vmatpush1.xpose.msra.mxu0 0.0
    %787 = vmatprep.subr.mxu0 0.0
    %788 = vmatpush1.xpose.msra.mxu0 0.0
    %789 = vmatprep.subr.mxu0 0.0
    %790 = vmatpush1.xpose.msra.mxu0 0.0
    %791 = vmatprep.subr.mxu0 0.0
    %792 = vmatpush1.xpose.msra.mxu0 0.0
    %793 = vmatprep.subr.mxu0 0.0
    %794 = vmatpush1.xpose.msra.mxu0 0.0
    %795 = vmatprep.subr.mxu0 0.0
    %796 = vmatpush1.xpose.msra.mxu0 0.0
    %797 = vmatprep.subr.mxu0 0.0
    %798 = vmatpush1.xpose.msra.mxu0 0.0
    %799 = vmatprep.subr.mxu0 0.0
    %800 = vmatpush1.xpose.msra.mxu0 0.0
    %801 = vmatprep.subr.mxu0 0.0
    %802 = vmatpush1.xpose.msra.mxu0 0.0
    %803 = vmatprep.subr.mxu0 0.0
    %804 = vmatpush1.xpose.msra.mxu0 0.0
    %805 = vmatprep.subr.mxu0 0.0
    %806 = vmatpush1.xpose.msra.mxu0 0.0
    %807 = vmatprep.subr.mxu0 0.0
    %808 = vmatpush1.xpose.msra.mxu0 0.0
    %809 = vmatprep.subr.mxu0 0.0
    %810 = vmatpush1.xpose.msra.mxu0 0.0
    %811 = vmatprep.subr.mxu0 0.0
    %812 = vmatpush1.xpose.msra.mxu0 0.0
    %813 = vmatprep.subr.mxu0 0.0
    %814 = vmatpush1.xpose.msra.mxu0 0.0
    %815 = vmatprep.subr.mxu0 0.0
    %816 = vmatpush1.xpose.msra.mxu0 0.0
    %817 = vmatprep.subr.mxu0 0.0
    %818 = vmatpush1.xpose.msra.mxu0 0.0
    %819 = vmatprep.subr.mxu0 0.0
    %820 = vmatpush1.xpose.msra.mxu0 0.0
    %821 = vmatprep.subr.mxu0 0.0
    %822 = vmatpush1.xpose.msra.mxu0 0.0
    %823 = vmatprep.mubr.f32.mxu0 0.0
    %824 = vmatmul.mubr.f32.gmra.mrb[0].mxu0 %v748
    %v825 = vpop.f32.mrb[0].mxu0
    %v826 = vadd.f32 0.0, %v825
    %v827 = vpop.f32.mrb[0].mxu0
    %828 = vmatprep.mubr.f32.mxu0 0.0
    %829 = vmatmul.mubr.f32.gmra.mrb[0].mxu0 %v751
    %v830 = vpop.f32.mrb[0].mxu0
    %v831 = vadd.f32 0.0, %v830
    %v832 = vpop.f32.mrb[0].mxu0
    %833 = vdwg.mxu0
    %v834 = vmul.f32 %v826, %v584
    %v835 = vmul.f32 %v831, %v584
    %v836 = vmul.f32 %v834, 1.442695
    %v837 = vpow.pop %v836
    %v838 = vmul.f32 %v835, 1.442695
    %v839 = vpow.pop %v838
    %v840 = vsel %vm680, %v837, 0.0
    %841 = vadd.xlane.f32.xlu0 %v840
    %v842 = vpop.xlane.xlu0 %841
    %v843 = vsel %vm680, %v839, 0.0
    %844 = vadd.xlane.f32.xlu0 %v843
    %v845 = vpop.xlane.xlu0 %844
    %v846 = vlog2.pop %v842
    %v847 = vmul.f32 %v846, 0.6931472
    %v848 = vlog2.pop %v845
    %v849 = vmul.f32 %v848, 0.6931472
    %v850 = vsub.f32 %v847, %v745
    %v851 = vsub.f32 %v849, %v746
    %v852 = vsel %vm693, %v850, 0.0
    %v853 = vsel %vm693, %v851, 0.0
    %v854 = vadd.f32 %v852, %v853
    %855 = vadd.xlane.f32.xlu0 %v854
    %v856 = vpop.xlane.xlu0 %855
    %v857 = vrot.slane %v856, 4
    %v858 = vadd.f32 %v856, %v857
    %v859 = vrot.slane %v858, 2
    %v860 = vadd.f32 %v858, %v859
    %v861 = vrot.slane %v860, 1
    %v862 = vadd.f32 %v860, %v861
    %s863 = vtos %v862
    %v864 = vrcp.pop 16.0
    %s865 = vtos %v864
    %s866 = smul.f32 %s863, %s865
    %s867 = sadd.f32 %s708, %s866
    %v868 = vrcp.pop 2.0
    %s869 = vtos %v868
    %s870 = smul.f32 %s867, %s869
    %v871 = vmul.f32 %v453, %v457
    %v872 = vmul.f32 %v454, %v458
    %v873 = vsel %vm249, %v871, 0.0
    %874 = vadd.xlane.f32.xlu0 %v873
    %v875 = vpop.xlane.xlu0 %874
    %v876 = vsel %vm249, %v872, 0.0
    %877 = vadd.xlane.f32.xlu0 %v876
    %v878 = vpop.xlane.xlu0 %877
    %v879 = vmul.f32 %v875, 2.0
    %v880 = vmul.f32 %v878, 2.0
    %v881 = vlaneseq
    %v882 = vshrl.u32 %v881, 7
    %v883 = vsub.s32 0, %v882
    %v884 = vrot.slane %v879, %v883
    %v885 = vsub.f32 %v884, %v879
    %v886 = vsub.f32 %v884, %v880
    %v887 = vlaneseq
    %v888 = vshrl.u32 %v887, 7
    %v889 = vadd.s32 %v888, 8
    %v890 = vsub.f32 0.0, %v885
    %v891 = vsub.f32 0.0, %v886
    %v892 = vmax.f32 %v890, 0.0
    %v893 = vmax.f32 %v891, 0.0
    %v894 = vand.u32 2147483647, %v890
    %v895 = vand.u32 2147483647, %v891
    %v896 = vsub.f32 0.0, %v894
    %v897 = vsub.f32 0.0, %v895
    %v898 = vmul.f32 %v896, 1.442695
    %v899 = vpow.pop %v898
    %v900 = vmul.f32 %v897, 1.442695
    %v901 = vpow.pop %v900
    %v902 = vadd.f32 %v899, 1.0
    %v903 = vadd.f32 %v901, 1.0
    %v904 = vlog2.pop %v902
    %v905 = vmul.f32 %v904, 0.6931472
    %v906 = vlog2.pop %v903
    %v907 = vmul.f32 %v906, 0.6931472
    %v908 = vadd.f32 %v892, %v905
    %v909 = vadd.f32 %v893, %v907
    %vm910 = vcmp.gt.s32.totalorder %v888, 0
    %vm911 = vcmp.gt.s32.totalorder %v889, 0
    %v912 = vsel %vm910, %v908, 0.0
    %v913 = vsel %vm911, %v909, 0.0
    %v914 = vsel %vm693, %v912, 0.0
    %v915 = vsel %vm693, %v913, 0.0
    %v916 = vadd.f32 %v914, %v915
    %917 = vadd.xlane.f32.xlu0 %v916
    %v918 = vpop.xlane.xlu0 %917
    %v919 = vrot.slane %v918, 4
    %v920 = vadd.f32 %v918, %v919
    %v921 = vrot.slane %v920, 2
    %v922 = vadd.f32 %v920, %v921
    %v923 = vrot.slane %v922, 1
    %v924 = vadd.f32 %v922, %v923
    %s925 = vtos %v924
    %v926 = vrcp.pop 15.0
    %s927 = vtos %v926
    %s928 = smul.f32 %s925, %s927
    %s929 = sadd.f32 %s870, %s928
    %v930 = vmul.f32 %v455, %v459
    %v931 = vmul.f32 %v456, %v460
    %v932 = vsel %vm249, %v930, 0.0
    %933 = vadd.xlane.f32.xlu0 %v932
    %v934 = vpop.xlane.xlu0 %933
    %v935 = vsel %vm249, %v931, 0.0
    %936 = vadd.xlane.f32.xlu0 %v935
    %v937 = vpop.xlane.xlu0 %936
    %v938 = vmul.f32 %v934, 2.0
    %v939 = vmul.f32 %v937, 2.0
    %v940 = vlaneseq
    %v941 = vshrl.u32 %v940, 7
    %v942 = vsub.s32 0, %v941
    %v943 = vrot.slane %v938, %v942
    %v944 = vsub.f32 %v943, %v938
    %v945 = vsub.f32 %v943, %v939
    %v946 = vsub.f32 0.0, %v944
    %v947 = vsub.f32 0.0, %v945
    %v948 = vmax.f32 %v946, 0.0
    %v949 = vmax.f32 %v947, 0.0
    %v950 = vand.u32 2147483647, %v946
    %v951 = vand.u32 2147483647, %v947
    %v952 = vsub.f32 0.0, %v950
    %v953 = vsub.f32 0.0, %v951
    %v954 = vmul.f32 %v952, 1.442695
    %v955 = vpow.pop %v954
    %v956 = vmul.f32 %v953, 1.442695
    %v957 = vpow.pop %v956
    %v958 = vadd.f32 %v955, 1.0
    %v959 = vadd.f32 %v957, 1.0
    %v960 = vlog2.pop %v958
    %v961 = vmul.f32 %v960, 0.6931472
    %v962 = vlog2.pop %v959
    %v963 = vmul.f32 %v962, 0.6931472
    %v964 = vadd.f32 %v948, %v961
    %v965 = vadd.f32 %v949, %v963
    %v966 = vsel %vm910, %v964, 0.0
    %v967 = vsel %vm911, %v965, 0.0
    %v968 = vsel %vm693, %v966, 0.0
    %v969 = vsel %vm693, %v967, 0.0
    %v970 = vadd.f32 %v968, %v969
    %971 = vadd.xlane.f32.xlu0 %v970
    %v972 = vpop.xlane.xlu0 %971
    %v973 = vrot.slane %v972, 4
    %v974 = vadd.f32 %v972, %v973
    %v975 = vrot.slane %v974, 2
    %v976 = vadd.f32 %v974, %v975
    %v977 = vrot.slane %v976, 1
    %v978 = vadd.f32 %v976, %v977
    %s979 = vtos %v978
    %v980 = vrcp.pop 15.0
    %s981 = vtos %v980
    %s982 = smul.f32 %s979, %s981
    %s983 = sadd.f32 %s929, %s982
    %v984 = vmul.f32 %v544, 0.25
    %v985 = vmul.f32 %v545, 0.25
    %v986 = vmul.f32 %v546, 0.25
    %v987 = vmul.f32 %v547, 0.25
    %v988 = vpack.c.bf16 %v985, %v984
    %v989 = vpack.c.bf16 %v987, %v986
    %v990 = vld [vmem:[%s7] sm:$0xf]
    %v991 = vld [vmem:[%s7 + $0x4] sm:$0xf]
    %v994 = vunpack.c.l.b16 %v990
    %v995 = vunpack.c.l.b16 %v991
    %v996 = vpack.c.b16 %v995, %v994
    %v998 = vsel %vm249, %v996, 0
    %1000 = vmatprep.subr.bf16.mxu0 0
    %1001 = vmatpush1.bf16.msra.mxu0 %v988
    %1002 = vmatprep.subr.bf16.mxu0 0
    %1003 = vmatpush1.bf16.msra.mxu0 %v989
    %1004 = vmatprep.subr.bf16.mxu0 0
    %1005 = vmatpush1.bf16.msra.mxu0 0
    %1006 = vmatprep.subr.bf16.mxu0 0
    %1007 = vmatpush1.bf16.msra.mxu0 0
    %1008 = vmatprep.subr.bf16.mxu0 0
    %1009 = vmatpush1.bf16.msra.mxu0 0
    %1010 = vmatprep.subr.bf16.mxu0 0
    %1011 = vmatpush1.bf16.msra.mxu0 0
    %1012 = vmatprep.subr.bf16.mxu0 0
    %1013 = vmatpush1.bf16.msra.mxu0 0
    %1014 = vmatprep.subr.bf16.mxu0 0
    %1015 = vmatpush1.bf16.msra.mxu0 0
    %1016 = vmatprep.subr.bf16.mxu0 0
    %1017 = vmatpush1.bf16.msra.mxu0 0
    %1018 = vmatprep.subr.bf16.mxu0 0
    %1019 = vmatpush1.bf16.msra.mxu0 0
    %1020 = vmatprep.subr.bf16.mxu0 0
    %1021 = vmatpush1.bf16.msra.mxu0 0
    %1022 = vmatprep.subr.bf16.mxu0 0
    %1023 = vmatpush1.bf16.msra.mxu0 0
    %1024 = vmatprep.subr.bf16.mxu0 0
    %1025 = vmatpush1.bf16.msra.mxu0 0
    %1026 = vmatprep.subr.bf16.mxu0 0
    %1027 = vmatpush1.bf16.msra.mxu0 0
    %1028 = vmatprep.subr.bf16.mxu0 0
    %1029 = vmatpush1.bf16.msra.mxu0 0
    %1030 = vmatprep.subr.bf16.mxu0 0
    %1031 = vmatpush1.bf16.msra.mxu0 0
    %1032 = vmatprep.mubr.bf16.mxu0 0
    %1033 = vmatmul.mubr.bf16.gmra.mrb[0].mxu0 %v998
    %v1034 = vpop.f32.mrb[0].mxu0
    %v1035 = vadd.f32 0.0, %v1034
    %v1036 = vpop.f32.mrb[0].mxu0
    %v1037 = vpop.f32.mrb[0].mxu0
    %v1038 = vadd.f32 0.0, %v1037
    %v1039 = vpop.f32.mrb[0].mxu0
    %1040 = vdwg.mxu0
    %v1041 = vld [vmem:[%s2] sm:$0xf]
    %v1042 = vld [vmem:[%s2 + $0x4] sm:$0xf]
    %v1043 = vld [vmem:[%s2 + $0x8] sm:$0xf]
    %v1044 = vld [vmem:[%s2 + $0xc] sm:$0xf]
    %v1045 = vld [vmem:[%s2 + $0x10] sm:$0xf]
    %v1046 = vld [vmem:[%s2 + $0x14] sm:$0xf]
    %v1047 = vld [vmem:[%s2 + $0x18] sm:$0xf]
    %v1048 = vld [vmem:[%s2 + $0x1c] sm:$0xf]
    %v1049 = vld [vmem:[%s2 + $0x20] sm:$0xf]
    %v1050 = vld [vmem:[%s2 + $0x24] sm:$0xf]
    %v1051 = vld [vmem:[%s2 + $0x28] sm:$0xf]
    %v1052 = vld [vmem:[%s2 + $0x2c] sm:$0xf]
    %v1053 = vld [vmem:[%s2 + $0x30] sm:$0xf]
    %v1054 = vld [vmem:[%s2 + $0x34] sm:$0xf]
    %v1055 = vld [vmem:[%s2 + $0x38] sm:$0xf]
    %v1056 = vld [vmem:[%s2 + $0x3c] sm:$0xf]
    %v1057 = vld [vmem:[%s2 + $0x40] sm:$0xf]
    %v1058 = vld [vmem:[%s2 + $0x44] sm:$0xf]
    %v1059 = vld [vmem:[%s2 + $0x48] sm:$0xf]
    %v1060 = vld [vmem:[%s2 + $0x4c] sm:$0xf]
    %v1061 = vld [vmem:[%s2 + $0x50] sm:$0xf]
    %v1062 = vld [vmem:[%s2 + $0x54] sm:$0xf]
    %v1063 = vld [vmem:[%s2 + $0x58] sm:$0xf]
    %v1064 = vld [vmem:[%s2 + $0x5c] sm:$0xf]
    %v1065 = vld [vmem:[%s2 + $0x60] sm:$0xf]
    %v1066 = vld [vmem:[%s2 + $0x64] sm:$0xf]
    %v1067 = vld [vmem:[%s2 + $0x68] sm:$0xf]
    %v1068 = vld [vmem:[%s2 + $0x6c] sm:$0xf]
    %v1069 = vld [vmem:[%s2 + $0x70] sm:$0xf]
    %v1070 = vld [vmem:[%s2 + $0x74] sm:$0xf]
    %v1071 = vld [vmem:[%s2 + $0x78] sm:$0xf]
    %v1072 = vld [vmem:[%s2 + $0x7c] sm:$0xf]
    %v1073 = vld [vmem:[%s4] sm:$0xf]
    %v1074 = vld [vmem:[%s4 + $0x4] sm:$0xf]
    %v1075 = vld [vmem:[%s4 + $0x8] sm:$0xf]
    %v1076 = vld [vmem:[%s4 + $0xc] sm:$0xf]
    %v1077 = vld [vmem:[%s4 + $0x10] sm:$0xf]
    %v1078 = vld [vmem:[%s4 + $0x14] sm:$0xf]
    %v1079 = vld [vmem:[%s4 + $0x18] sm:$0xf]
    %v1080 = vld [vmem:[%s4 + $0x1c] sm:$0xf]
    %v1113 = vunpack.c.l.b16 %v1041
    %v1114 = vunpack.c.l.b16 %v1042
    %v1115 = vunpack.c.l.b16 %v1043
    %v1116 = vunpack.c.l.b16 %v1044
    %v1117 = vunpack.c.l.b16 %v1045
    %v1118 = vunpack.c.l.b16 %v1046
    %v1119 = vunpack.c.l.b16 %v1047
    %v1120 = vunpack.c.l.b16 %v1048
    %v1121 = vunpack.c.l.b16 %v1049
    %v1122 = vunpack.c.l.b16 %v1050
    %v1123 = vunpack.c.l.b16 %v1051
    %v1124 = vunpack.c.l.b16 %v1052
    %v1125 = vunpack.c.l.b16 %v1053
    %v1126 = vunpack.c.l.b16 %v1054
    %v1127 = vunpack.c.l.b16 %v1055
    %v1128 = vunpack.c.l.b16 %v1056
    %v1129 = vunpack.c.l.b16 %v1057
    %v1130 = vunpack.c.l.b16 %v1058
    %v1131 = vunpack.c.l.b16 %v1059
    %v1132 = vunpack.c.l.b16 %v1060
    %v1133 = vunpack.c.l.b16 %v1061
    %v1134 = vunpack.c.l.b16 %v1062
    %v1135 = vunpack.c.l.b16 %v1063
    %v1136 = vunpack.c.l.b16 %v1064
    %v1137 = vunpack.c.l.b16 %v1065
    %v1138 = vunpack.c.l.b16 %v1066
    %v1139 = vunpack.c.l.b16 %v1067
    %v1140 = vunpack.c.l.b16 %v1068
    %v1141 = vunpack.c.l.b16 %v1069
    %v1142 = vunpack.c.l.b16 %v1070
    %v1143 = vunpack.c.l.b16 %v1071
    %v1144 = vunpack.c.l.b16 %v1072
    %v1145 = vpack.c.b16 %v1114, %v1113
    %v1146 = vpack.c.b16 %v1116, %v1115
    %v1147 = vpack.c.b16 %v1118, %v1117
    %v1148 = vpack.c.b16 %v1120, %v1119
    %v1149 = vpack.c.b16 %v1122, %v1121
    %v1150 = vpack.c.b16 %v1124, %v1123
    %v1151 = vpack.c.b16 %v1126, %v1125
    %v1152 = vpack.c.b16 %v1128, %v1127
    %v1153 = vpack.c.b16 %v1130, %v1129
    %v1154 = vpack.c.b16 %v1132, %v1131
    %v1155 = vpack.c.b16 %v1134, %v1133
    %v1156 = vpack.c.b16 %v1136, %v1135
    %v1157 = vpack.c.b16 %v1138, %v1137
    %v1158 = vpack.c.b16 %v1140, %v1139
    %v1159 = vpack.c.b16 %v1142, %v1141
    %v1160 = vpack.c.b16 %v1144, %v1143
    %v1169 = vunpack.c.l.b16 %v1073
    %v1170 = vunpack.c.l.b16 %v1074
    %v1171 = vunpack.c.l.b16 %v1075
    %v1172 = vunpack.c.l.b16 %v1076
    %v1173 = vunpack.c.l.b16 %v1077
    %v1174 = vunpack.c.l.b16 %v1078
    %v1175 = vunpack.c.l.b16 %v1079
    %v1176 = vunpack.c.l.b16 %v1080
    %v1177 = vpack.c.b16 %v1170, %v1169
    %v1178 = vpack.c.b16 %v1172, %v1171
    %v1179 = vpack.c.b16 %v1174, %v1173
    %v1180 = vpack.c.b16 %v1176, %v1175
    %vm1185 = vcmask 523264
    %v1187 = vsel %vm1185, %v1145, 0
    %v1190 = vsel %vm1185, %v1146, 0
    %v1193 = vsel %vm1185, %v1147, 0
    %v1196 = vsel %vm1185, %v1148, 0
    %v1199 = vsel %vm1185, %v1149, 0
    %v1202 = vsel %vm1185, %v1150, 0
    %v1205 = vsel %vm1185, %v1151, 0
    %v1208 = vsel %vm1185, %v1152, 0
    %v1211 = vsel %vm1185, %v1153, 0
    %v1214 = vsel %vm1185, %v1154, 0
    %v1217 = vsel %vm1185, %v1155, 0
    %v1220 = vsel %vm1185, %v1156, 0
    %v1223 = vsel %vm1185, %v1157, 0
    %v1226 = vsel %vm1185, %v1158, 0
    %v1229 = vsel %vm1185, %v1159, 0
    %v1232 = vsel %vm1185, %v1160, 0
    %1234 = vmatprep.subr.bf16.mxu0 0
    %1235 = vmatpush1.bf16.msra.mxu0 %v1177
    %1236 = vmatprep.subr.bf16.mxu0 0
    %1237 = vmatpush1.bf16.msra.mxu0 %v1178
    %1238 = vmatprep.subr.bf16.mxu0 0
    %1239 = vmatpush1.bf16.msra.mxu0 %v1179
    %1240 = vmatprep.subr.bf16.mxu0 0
    %1241 = vmatpush1.bf16.msra.mxu0 %v1180
    %1242 = vmatprep.subr.bf16.mxu0 0
    %1243 = vmatpush1.bf16.msra.mxu0 0
    %1244 = vmatprep.subr.bf16.mxu0 0
    %1245 = vmatpush1.bf16.msra.mxu0 0
    %1246 = vmatprep.subr.bf16.mxu0 0
    %1247 = vmatpush1.bf16.msra.mxu0 0
    %1248 = vmatprep.subr.bf16.mxu0 0
    %1249 = vmatpush1.bf16.msra.mxu0 0
    %1250 = vmatprep.subr.bf16.mxu0 0
    %1251 = vmatpush1.bf16.msra.mxu0 0
    %1252 = vmatprep.subr.bf16.mxu0 0
    %1253 = vmatpush1.bf16.msra.mxu0 0
    %1254 = vmatprep.subr.bf16.mxu0 0
    %1255 = vmatpush1.bf16.msra.mxu0 0
    %1256 = vmatprep.subr.bf16.mxu0 0
    %1257 = vmatpush1.bf16.msra.mxu0 0
    %1258 = vmatprep.subr.bf16.mxu0 0
    %1259 = vmatpush1.bf16.msra.mxu0 0
    %1260 = vmatprep.subr.bf16.mxu0 0
    %1261 = vmatpush1.bf16.msra.mxu0 0
    %1262 = vmatprep.subr.bf16.mxu0 0
    %1263 = vmatpush1.bf16.msra.mxu0 0
    %1264 = vmatprep.subr.bf16.mxu0 0
    %1265 = vmatpush1.bf16.msra.mxu0 0
    %1266 = vmatprep.mubr.bf16.mxu0 0
    %1267 = vmatmul.mubr.bf16.gmra.mrb[0].mxu0 %v1187
    %v1268 = vpop.f32.mrb[0].mxu0
    %v1269 = vadd.f32 0.0, %v1268
    %v1270 = vpop.f32.mrb[0].mxu0
    %v1271 = vpop.f32.mrb[0].mxu0
    %v1272 = vadd.f32 0.0, %v1271
    %v1273 = vpop.f32.mrb[0].mxu0
    %1274 = vmatprep.mubr.bf16.mxu0 0
    %1275 = vmatmul.mubr.bf16.gmra.mrb[0].mxu0 %v1190
    %v1276 = vpop.f32.mrb[0].mxu0
    %v1277 = vadd.f32 0.0, %v1276
    %v1278 = vpop.f32.mrb[0].mxu0
    %v1279 = vpop.f32.mrb[0].mxu0
    %v1280 = vadd.f32 0.0, %v1279
    %v1281 = vpop.f32.mrb[0].mxu0
    %1282 = vmatprep.mubr.bf16.mxu0 0
    %1283 = vmatmul.mubr.bf16.gmra.mrb[0].mxu0 %v1193
    %v1284 = vpop.f32.mrb[0].mxu0
    %v1285 = vadd.f32 0.0, %v1284
    %v1286 = vpop.f32.mrb[0].mxu0
    %v1287 = vpop.f32.mrb[0].mxu0
    %v1288 = vadd.f32 0.0, %v1287
    %v1289 = vpop.f32.mrb[0].mxu0
    %1290 = vmatprep.mubr.bf16.mxu0 0
    %1291 = vmatmul.mubr.bf16.gmra.mrb[0].mxu0 %v1196
    %v1292 = vpop.f32.mrb[0].mxu0
    %v1293 = vadd.f32 0.0, %v1292
    %v1294 = vpop.f32.mrb[0].mxu0
    %v1295 = vpop.f32.mrb[0].mxu0
    %v1296 = vadd.f32 0.0, %v1295
    %v1297 = vpop.f32.mrb[0].mxu0
    %1298 = vmatprep.mubr.bf16.mxu0 0
    %1299 = vmatmul.mubr.bf16.gmra.mrb[0].mxu0 %v1199
    %v1300 = vpop.f32.mrb[0].mxu0
    %v1301 = vadd.f32 0.0, %v1300
    %v1302 = vpop.f32.mrb[0].mxu0
    %v1303 = vpop.f32.mrb[0].mxu0
    %v1304 = vadd.f32 0.0, %v1303
    %v1305 = vpop.f32.mrb[0].mxu0
    %1306 = vmatprep.mubr.bf16.mxu0 0
    %1307 = vmatmul.mubr.bf16.gmra.mrb[0].mxu0 %v1202
    %v1308 = vpop.f32.mrb[0].mxu0
    %v1309 = vadd.f32 0.0, %v1308
    %v1310 = vpop.f32.mrb[0].mxu0
    %v1311 = vpop.f32.mrb[0].mxu0
    %v1312 = vadd.f32 0.0, %v1311
    %v1313 = vpop.f32.mrb[0].mxu0
    %1314 = vmatprep.mubr.bf16.mxu0 0
    %1315 = vmatmul.mubr.bf16.gmra.mrb[0].mxu0 %v1205
    %v1316 = vpop.f32.mrb[0].mxu0
    %v1317 = vadd.f32 0.0, %v1316
    %v1318 = vpop.f32.mrb[0].mxu0
    %v1319 = vpop.f32.mrb[0].mxu0
    %v1320 = vadd.f32 0.0, %v1319
    %v1321 = vpop.f32.mrb[0].mxu0
    %1322 = vmatprep.mubr.bf16.mxu0 0
    %1323 = vmatmul.mubr.bf16.gmra.mrb[0].mxu0 %v1208
    %v1324 = vpop.f32.mrb[0].mxu0
    %v1325 = vadd.f32 0.0, %v1324
    %v1326 = vpop.f32.mrb[0].mxu0
    %v1327 = vpop.f32.mrb[0].mxu0
    %v1328 = vadd.f32 0.0, %v1327
    %v1329 = vpop.f32.mrb[0].mxu0
    %1330 = vmatprep.mubr.bf16.mxu0 0
    %1331 = vmatmul.mubr.bf16.gmra.mrb[0].mxu0 %v1211
    %v1332 = vpop.f32.mrb[0].mxu0
    %v1333 = vadd.f32 0.0, %v1332
    %v1334 = vpop.f32.mrb[0].mxu0
    %v1335 = vpop.f32.mrb[0].mxu0
    %v1336 = vadd.f32 0.0, %v1335
    %v1337 = vpop.f32.mrb[0].mxu0
    %1338 = vmatprep.mubr.bf16.mxu0 0
    %1339 = vmatmul.mubr.bf16.gmra.mrb[0].mxu0 %v1214
    %v1340 = vpop.f32.mrb[0].mxu0
    %v1341 = vadd.f32 0.0, %v1340
    %v1342 = vpop.f32.mrb[0].mxu0
    %v1343 = vpop.f32.mrb[0].mxu0
    %v1344 = vadd.f32 0.0, %v1343
    %v1345 = vpop.f32.mrb[0].mxu0
    %1346 = vmatprep.mubr.bf16.mxu0 0
    %1347 = vmatmul.mubr.bf16.gmra.mrb[0].mxu0 %v1217
    %v1348 = vpop.f32.mrb[0].mxu0
    %v1349 = vadd.f32 0.0, %v1348
    %v1350 = vpop.f32.mrb[0].mxu0
    %v1351 = vpop.f32.mrb[0].mxu0
    %v1352 = vadd.f32 0.0, %v1351
    %v1353 = vpop.f32.mrb[0].mxu0
    %1354 = vmatprep.mubr.bf16.mxu0 0
    %1355 = vmatmul.mubr.bf16.gmra.mrb[0].mxu0 %v1220
    %v1356 = vpop.f32.mrb[0].mxu0
    %v1357 = vadd.f32 0.0, %v1356
    %v1358 = vpop.f32.mrb[0].mxu0
    %v1359 = vpop.f32.mrb[0].mxu0
    %v1360 = vadd.f32 0.0, %v1359
    %v1361 = vpop.f32.mrb[0].mxu0
    %1362 = vmatprep.mubr.bf16.mxu0 0
    %1363 = vmatmul.mubr.bf16.gmra.mrb[0].mxu0 %v1223
    %v1364 = vpop.f32.mrb[0].mxu0
    %v1365 = vadd.f32 0.0, %v1364
    %v1366 = vpop.f32.mrb[0].mxu0
    %v1367 = vpop.f32.mrb[0].mxu0
    %v1368 = vadd.f32 0.0, %v1367
    %v1369 = vpop.f32.mrb[0].mxu0
    %1370 = vmatprep.mubr.bf16.mxu0 0
    %1371 = vmatmul.mubr.bf16.gmra.mrb[0].mxu0 %v1226
    %v1372 = vpop.f32.mrb[0].mxu0
    %v1373 = vadd.f32 0.0, %v1372
    %v1374 = vpop.f32.mrb[0].mxu0
    %v1375 = vpop.f32.mrb[0].mxu0
    %v1376 = vadd.f32 0.0, %v1375
    %v1377 = vpop.f32.mrb[0].mxu0
    %1378 = vmatprep.mubr.bf16.mxu0 0
    %1379 = vmatmul.mubr.bf16.gmra.mrb[0].mxu0 %v1229
    %v1380 = vpop.f32.mrb[0].mxu0
    %v1381 = vadd.f32 0.0, %v1380
    %v1382 = vpop.f32.mrb[0].mxu0
    %v1383 = vpop.f32.mrb[0].mxu0
    %v1384 = vadd.f32 0.0, %v1383
    %v1385 = vpop.f32.mrb[0].mxu0
    %1386 = vmatprep.mubr.bf16.mxu0 0
    %1387 = vmatmul.mubr.bf16.gmra.mrb[0].mxu0 %v1232
    %v1388 = vpop.f32.mrb[0].mxu0
    %v1389 = vadd.f32 0.0, %v1388
    %v1390 = vpop.f32.mrb[0].mxu0
    %v1391 = vpop.f32.mrb[0].mxu0
    %v1392 = vadd.f32 0.0, %v1391
    %v1393 = vpop.f32.mrb[0].mxu0
    %1394 = vdwg.mxu0
    %v1395 = vmax.f32 %v1269, 0.0
    %v1396 = vmax.f32 %v1272, 0.0
    %v1397 = vmax.f32 %v1277, 0.0
    %v1398 = vmax.f32 %v1280, 0.0
    %v1399 = vmax.f32 %v1285, 0.0
    %v1400 = vmax.f32 %v1288, 0.0
    %v1401 = vmax.f32 %v1293, 0.0
    %v1402 = vmax.f32 %v1296, 0.0
    %v1403 = vmax.f32 %v1301, 0.0
    %v1404 = vmax.f32 %v1304, 0.0
    %v1405 = vmax.f32 %v1309, 0.0
    %v1406 = vmax.f32 %v1312, 0.0
    %v1407 = vmax.f32 %v1317, 0.0
    %v1408 = vmax.f32 %v1320, 0.0
    %v1409 = vmax.f32 %v1325, 0.0
    %v1410 = vmax.f32 %v1328, 0.0
    %v1411 = vmax.f32 %v1333, 0.0
    %v1412 = vmax.f32 %v1336, 0.0
    %v1413 = vmax.f32 %v1341, 0.0
    %v1414 = vmax.f32 %v1344, 0.0
    %v1415 = vmax.f32 %v1349, 0.0
    %v1416 = vmax.f32 %v1352, 0.0
    %v1417 = vmax.f32 %v1357, 0.0
    %v1418 = vmax.f32 %v1360, 0.0
    %v1419 = vmax.f32 %v1365, 0.0
    %v1420 = vmax.f32 %v1368, 0.0
    %v1421 = vmax.f32 %v1373, 0.0
    %v1422 = vmax.f32 %v1376, 0.0
    %v1423 = vmax.f32 %v1381, 0.0
    %v1424 = vmax.f32 %v1384, 0.0
    %v1425 = vmax.f32 %v1389, 0.0
    %v1426 = vmax.f32 %v1392, 0.0
    %v1427 = vpack.c.bf16 %v1396, %v1395
    %v1428 = vpack.c.bf16 %v1398, %v1397
    %v1429 = vpack.c.bf16 %v1400, %v1399
    %v1430 = vpack.c.bf16 %v1402, %v1401
    %v1431 = vpack.c.bf16 %v1404, %v1403
    %v1432 = vpack.c.bf16 %v1406, %v1405
    %v1433 = vpack.c.bf16 %v1408, %v1407
    %v1434 = vpack.c.bf16 %v1410, %v1409
    %v1435 = vpack.c.bf16 %v1412, %v1411
    %v1436 = vpack.c.bf16 %v1414, %v1413
    %v1437 = vpack.c.bf16 %v1416, %v1415
    %v1438 = vpack.c.bf16 %v1418, %v1417
    %v1439 = vpack.c.bf16 %v1420, %v1419
    %v1440 = vpack.c.bf16 %v1422, %v1421
    %v1441 = vpack.c.bf16 %v1424, %v1423
    %v1442 = vpack.c.bf16 %v1426, %v1425
    %v1443 = vld [vmem:[%s5] sm:$0xf]
    %v1444 = vld [vmem:[%s5 + $0x4] sm:$0xf]
    %v1445 = vld [vmem:[%s5 + $0x8] sm:$0xf]
    %v1446 = vld [vmem:[%s5 + $0xc] sm:$0xf]
    %v1451 = vunpack.c.l.b16 %v1443
    %v1452 = vunpack.c.l.b16 %v1444
    %v1453 = vunpack.c.l.b16 %v1445
    %v1454 = vunpack.c.l.b16 %v1446
    %v1455 = vpack.c.b16 %v1452, %v1451
    %v1456 = vpack.c.b16 %v1454, %v1453
    %v1460 = vsel %vm249, %v1427, 0
    %v1463 = vsel %vm249, %v1428, 0
    %v1466 = vsel %vm249, %v1429, 0
    %v1469 = vsel %vm249, %v1430, 0
    %v1472 = vsel %vm249, %v1431, 0
    %v1475 = vsel %vm249, %v1432, 0
    %v1478 = vsel %vm249, %v1433, 0
    %v1481 = vsel %vm249, %v1434, 0
    %v1484 = vsel %vm249, %v1435, 0
    %v1487 = vsel %vm249, %v1436, 0
    %v1490 = vsel %vm249, %v1437, 0
    %v1493 = vsel %vm249, %v1438, 0
    %v1496 = vsel %vm249, %v1439, 0
    %v1499 = vsel %vm249, %v1440, 0
    %v1502 = vsel %vm249, %v1441, 0
    %v1505 = vsel %vm249, %v1442, 0
    %1507 = vmatprep.subr.bf16.mxu0 0
    %1508 = vmatpush1.bf16.msra.mxu0 %v1455
    %1509 = vmatprep.subr.bf16.mxu0 0
    %1510 = vmatpush1.bf16.msra.mxu0 %v1456
    %1511 = vmatprep.subr.bf16.mxu0 0
    %1512 = vmatpush1.bf16.msra.mxu0 0
    %1513 = vmatprep.subr.bf16.mxu0 0
    %1514 = vmatpush1.bf16.msra.mxu0 0
    %1515 = vmatprep.subr.bf16.mxu0 0
    %1516 = vmatpush1.bf16.msra.mxu0 0
    %1517 = vmatprep.subr.bf16.mxu0 0
    %1518 = vmatpush1.bf16.msra.mxu0 0
    %1519 = vmatprep.subr.bf16.mxu0 0
    %1520 = vmatpush1.bf16.msra.mxu0 0
    %1521 = vmatprep.subr.bf16.mxu0 0
    %1522 = vmatpush1.bf16.msra.mxu0 0
    %1523 = vmatprep.subr.bf16.mxu0 0
    %1524 = vmatpush1.bf16.msra.mxu0 0
    %1525 = vmatprep.subr.bf16.mxu0 0
    %1526 = vmatpush1.bf16.msra.mxu0 0
    %1527 = vmatprep.subr.bf16.mxu0 0
    %1528 = vmatpush1.bf16.msra.mxu0 0
    %1529 = vmatprep.subr.bf16.mxu0 0
    %1530 = vmatpush1.bf16.msra.mxu0 0
    %1531 = vmatprep.subr.bf16.mxu0 0
    %1532 = vmatpush1.bf16.msra.mxu0 0
    %1533 = vmatprep.subr.bf16.mxu0 0
    %1534 = vmatpush1.bf16.msra.mxu0 0
    %1535 = vmatprep.subr.bf16.mxu0 0
    %1536 = vmatpush1.bf16.msra.mxu0 0
    %1537 = vmatprep.subr.bf16.mxu0 0
    %1538 = vmatpush1.bf16.msra.mxu0 0
    %1539 = vmatprep.mubr.bf16.mxu0 0
    %1540 = vmatmul.mubr.bf16.gmra.mrb[0].mxu0 %v1460
    %v1541 = vpop.f32.mrb[0].mxu0
    %v1542 = vadd.f32 0.0, %v1541
    %v1543 = vpop.f32.mrb[0].mxu0
    %v1544 = vpop.f32.mrb[0].mxu0
    %v1545 = vadd.f32 0.0, %v1544
    %v1546 = vpop.f32.mrb[0].mxu0
    %1547 = vmatprep.mubr.bf16.mxu0 0
    %1548 = vmatmul.mubr.bf16.gmra.mrb[0].mxu0 %v1463
    %v1549 = vpop.f32.mrb[0].mxu0
    %v1550 = vadd.f32 0.0, %v1549
    %v1551 = vpop.f32.mrb[0].mxu0
    %v1552 = vpop.f32.mrb[0].mxu0
    %v1553 = vadd.f32 0.0, %v1552
    %v1554 = vpop.f32.mrb[0].mxu0
    %1555 = vmatprep.mubr.bf16.mxu0 0
    %1556 = vmatmul.mubr.bf16.gmra.mrb[0].mxu0 %v1466
    %v1557 = vpop.f32.mrb[0].mxu0
    %v1558 = vadd.f32 0.0, %v1557
    %v1559 = vpop.f32.mrb[0].mxu0
    %v1560 = vpop.f32.mrb[0].mxu0
    %v1561 = vadd.f32 0.0, %v1560
    %v1562 = vpop.f32.mrb[0].mxu0
    %1563 = vmatprep.mubr.bf16.mxu0 0
    %1564 = vmatmul.mubr.bf16.gmra.mrb[0].mxu0 %v1469
    %v1565 = vpop.f32.mrb[0].mxu0
    %v1566 = vadd.f32 0.0, %v1565
    %v1567 = vpop.f32.mrb[0].mxu0
    %v1568 = vpop.f32.mrb[0].mxu0
    %v1569 = vadd.f32 0.0, %v1568
    %v1570 = vpop.f32.mrb[0].mxu0
    %1571 = vmatprep.mubr.bf16.mxu0 0
    %1572 = vmatmul.mubr.bf16.gmra.mrb[0].mxu0 %v1472
    %v1573 = vpop.f32.mrb[0].mxu0
    %v1574 = vadd.f32 0.0, %v1573
    %v1575 = vpop.f32.mrb[0].mxu0
    %v1576 = vpop.f32.mrb[0].mxu0
    %v1577 = vadd.f32 0.0, %v1576
    %v1578 = vpop.f32.mrb[0].mxu0
    %1579 = vmatprep.mubr.bf16.mxu0 0
    %1580 = vmatmul.mubr.bf16.gmra.mrb[0].mxu0 %v1475
    %v1581 = vpop.f32.mrb[0].mxu0
    %v1582 = vadd.f32 0.0, %v1581
    %v1583 = vpop.f32.mrb[0].mxu0
    %v1584 = vpop.f32.mrb[0].mxu0
    %v1585 = vadd.f32 0.0, %v1584
    %v1586 = vpop.f32.mrb[0].mxu0
    %1587 = vmatprep.mubr.bf16.mxu0 0
    %1588 = vmatmul.mubr.bf16.gmra.mrb[0].mxu0 %v1478
    %v1589 = vpop.f32.mrb[0].mxu0
    %v1590 = vadd.f32 0.0, %v1589
    %v1591 = vpop.f32.mrb[0].mxu0
    %v1592 = vpop.f32.mrb[0].mxu0
    %v1593 = vadd.f32 0.0, %v1592
    %v1594 = vpop.f32.mrb[0].mxu0
    %1595 = vmatprep.mubr.bf16.mxu0 0
    %1596 = vmatmul.mubr.bf16.gmra.mrb[0].mxu0 %v1481
    %v1597 = vpop.f32.mrb[0].mxu0
    %v1598 = vadd.f32 0.0, %v1597
    %v1599 = vpop.f32.mrb[0].mxu0
    %v1600 = vpop.f32.mrb[0].mxu0
    %v1601 = vadd.f32 0.0, %v1600
    %v1602 = vpop.f32.mrb[0].mxu0
    %1603 = vmatprep.mubr.bf16.mxu0 0
    %1604 = vmatmul.mubr.bf16.gmra.mrb[0].mxu0 %v1484
    %v1605 = vpop.f32.mrb[0].mxu0
    %v1606 = vadd.f32 0.0, %v1605
    %v1607 = vpop.f32.mrb[0].mxu0
    %v1608 = vpop.f32.mrb[0].mxu0
    %v1609 = vadd.f32 0.0, %v1608
    %v1610 = vpop.f32.mrb[0].mxu0
    %1611 = vmatprep.mubr.bf16.mxu0 0
    %1612 = vmatmul.mubr.bf16.gmra.mrb[0].mxu0 %v1487
    %v1613 = vpop.f32.mrb[0].mxu0
    %v1614 = vadd.f32 0.0, %v1613
    %v1615 = vpop.f32.mrb[0].mxu0
    %v1616 = vpop.f32.mrb[0].mxu0
    %v1617 = vadd.f32 0.0, %v1616
    %v1618 = vpop.f32.mrb[0].mxu0
    %1619 = vmatprep.mubr.bf16.mxu0 0
    %1620 = vmatmul.mubr.bf16.gmra.mrb[0].mxu0 %v1490
    %v1621 = vpop.f32.mrb[0].mxu0
    %v1622 = vadd.f32 0.0, %v1621
    %v1623 = vpop.f32.mrb[0].mxu0
    %v1624 = vpop.f32.mrb[0].mxu0
    %v1625 = vadd.f32 0.0, %v1624
    %v1626 = vpop.f32.mrb[0].mxu0
    %1627 = vmatprep.mubr.bf16.mxu0 0
    %1628 = vmatmul.mubr.bf16.gmra.mrb[0].mxu0 %v1493
    %v1629 = vpop.f32.mrb[0].mxu0
    %v1630 = vadd.f32 0.0, %v1629
    %v1631 = vpop.f32.mrb[0].mxu0
    %v1632 = vpop.f32.mrb[0].mxu0
    %v1633 = vadd.f32 0.0, %v1632
    %v1634 = vpop.f32.mrb[0].mxu0
    %1635 = vmatprep.mubr.bf16.mxu0 0
    %1636 = vmatmul.mubr.bf16.gmra.mrb[0].mxu0 %v1496
    %v1637 = vpop.f32.mrb[0].mxu0
    %v1638 = vadd.f32 0.0, %v1637
    %v1639 = vpop.f32.mrb[0].mxu0
    %v1640 = vpop.f32.mrb[0].mxu0
    %v1641 = vadd.f32 0.0, %v1640
    %v1642 = vpop.f32.mrb[0].mxu0
    %1643 = vmatprep.mubr.bf16.mxu0 0
    %1644 = vmatmul.mubr.bf16.gmra.mrb[0].mxu0 %v1499
    %v1645 = vpop.f32.mrb[0].mxu0
    %v1646 = vadd.f32 0.0, %v1645
    %v1647 = vpop.f32.mrb[0].mxu0
    %v1648 = vpop.f32.mrb[0].mxu0
    %v1649 = vadd.f32 0.0, %v1648
    %v1650 = vpop.f32.mrb[0].mxu0
    %1651 = vmatprep.mubr.bf16.mxu0 0
    %1652 = vmatmul.mubr.bf16.gmra.mrb[0].mxu0 %v1502
    %v1653 = vpop.f32.mrb[0].mxu0
    %v1654 = vadd.f32 0.0, %v1653
    %v1655 = vpop.f32.mrb[0].mxu0
    %v1656 = vpop.f32.mrb[0].mxu0
    %v1657 = vadd.f32 0.0, %v1656
    %v1658 = vpop.f32.mrb[0].mxu0
    %1659 = vmatprep.mubr.bf16.mxu0 0
    %1660 = vmatmul.mubr.bf16.gmra.mrb[0].mxu0 %v1505
    %v1661 = vpop.f32.mrb[0].mxu0
    %v1662 = vadd.f32 0.0, %v1661
    %v1663 = vpop.f32.mrb[0].mxu0
    %v1664 = vpop.f32.mrb[0].mxu0
    %v1665 = vadd.f32 0.0, %v1664
    %v1666 = vpop.f32.mrb[0].mxu0
    %1667 = vdwg.mxu0
    %v1668 = vmax.f32 %v1542, 0.0
    %v1669 = vmax.f32 %v1545, 0.0
    %v1670 = vmax.f32 %v1550, 0.0
    %v1671 = vmax.f32 %v1553, 0.0
    %v1672 = vmax.f32 %v1558, 0.0
    %v1673 = vmax.f32 %v1561, 0.0
    %v1674 = vmax.f32 %v1566, 0.0
    %v1675 = vmax.f32 %v1569, 0.0
    %v1676 = vmax.f32 %v1574, 0.0
    %v1677 = vmax.f32 %v1577, 0.0
    %v1678 = vmax.f32 %v1582, 0.0
    %v1679 = vmax.f32 %v1585, 0.0
    %v1680 = vmax.f32 %v1590, 0.0
    %v1681 = vmax.f32 %v1593, 0.0
    %v1682 = vmax.f32 %v1598, 0.0
    %v1683 = vmax.f32 %v1601, 0.0
    %v1684 = vmax.f32 %v1606, 0.0
    %v1685 = vmax.f32 %v1609, 0.0
    %v1686 = vmax.f32 %v1614, 0.0
    %v1687 = vmax.f32 %v1617, 0.0
    %v1688 = vmax.f32 %v1622, 0.0
    %v1689 = vmax.f32 %v1625, 0.0
    %v1690 = vmax.f32 %v1630, 0.0
    %v1691 = vmax.f32 %v1633, 0.0
    %v1692 = vmax.f32 %v1638, 0.0
    %v1693 = vmax.f32 %v1641, 0.0
    %v1694 = vmax.f32 %v1646, 0.0
    %v1695 = vmax.f32 %v1649, 0.0
    %v1696 = vmax.f32 %v1654, 0.0
    %v1697 = vmax.f32 %v1657, 0.0
    %v1698 = vmax.f32 %v1662, 0.0
    %v1699 = vmax.f32 %v1665, 0.0
    %v1700 = vpack.c.bf16 %v1669, %v1668
    %v1701 = vpack.c.bf16 %v1671, %v1670
    %v1702 = vpack.c.bf16 %v1673, %v1672
    %v1703 = vpack.c.bf16 %v1675, %v1674
    %v1704 = vpack.c.bf16 %v1677, %v1676
    %v1705 = vpack.c.bf16 %v1679, %v1678
    %v1706 = vpack.c.bf16 %v1681, %v1680
    %v1707 = vpack.c.bf16 %v1683, %v1682
    %v1708 = vpack.c.bf16 %v1685, %v1684
    %v1709 = vpack.c.bf16 %v1687, %v1686
    %v1710 = vpack.c.bf16 %v1689, %v1688
    %v1711 = vpack.c.bf16 %v1691, %v1690
    %v1712 = vpack.c.bf16 %v1693, %v1692
    %v1713 = vpack.c.bf16 %v1695, %v1694
    %v1714 = vpack.c.bf16 %v1697, %v1696
    %v1715 = vpack.c.bf16 %v1699, %v1698
    %v1716 = vld [vmem:[%s6] sm:$0xf]
    %v1717 = vld [vmem:[%s6 + $0x4] sm:$0xf]
    %v1718 = vld [vmem:[%s6 + $0x8] sm:$0xf]
    %v1719 = vld [vmem:[%s6 + $0xc] sm:$0xf]
    %v1724 = vunpack.c.l.b16 %v1716
    %v1725 = vunpack.c.l.b16 %v1717
    %v1726 = vunpack.c.l.b16 %v1718
    %v1727 = vunpack.c.l.b16 %v1719
    %v1728 = vpack.c.b16 %v1725, %v1724
    %v1729 = vpack.c.b16 %v1727, %v1726
    %v1733 = vsel %vm249, %v1700, 0
    %v1736 = vsel %vm249, %v1701, 0
    %v1739 = vsel %vm249, %v1702, 0
    %v1742 = vsel %vm249, %v1703, 0
    %v1745 = vsel %vm249, %v1704, 0
    %v1748 = vsel %vm249, %v1705, 0
    %v1751 = vsel %vm249, %v1706, 0
    %v1754 = vsel %vm249, %v1707, 0
    %v1757 = vsel %vm249, %v1708, 0
    %v1760 = vsel %vm249, %v1709, 0
    %v1763 = vsel %vm249, %v1710, 0
    %v1766 = vsel %vm249, %v1711, 0
    %v1769 = vsel %vm249, %v1712, 0
    %v1772 = vsel %vm249, %v1713, 0
    %v1775 = vsel %vm249, %v1714, 0
    %v1778 = vsel %vm249, %v1715, 0
    %1780 = vmatprep.subr.bf16.mxu0 0
    %1781 = vmatpush1.bf16.msra.mxu0 %v1728
    %1782 = vmatprep.subr.bf16.mxu0 0
    %1783 = vmatpush1.bf16.msra.mxu0 %v1729
    %1784 = vmatprep.subr.bf16.mxu0 0
    %1785 = vmatpush1.bf16.msra.mxu0 0
    %1786 = vmatprep.subr.bf16.mxu0 0
    %1787 = vmatpush1.bf16.msra.mxu0 0
    %1788 = vmatprep.subr.bf16.mxu0 0
    %1789 = vmatpush1.bf16.msra.mxu0 0
    %1790 = vmatprep.subr.bf16.mxu0 0
    %1791 = vmatpush1.bf16.msra.mxu0 0
    %1792 = vmatprep.subr.bf16.mxu0 0
    %1793 = vmatpush1.bf16.msra.mxu0 0
    %1794 = vmatprep.subr.bf16.mxu0 0
    %1795 = vmatpush1.bf16.msra.mxu0 0
    %1796 = vmatprep.subr.bf16.mxu0 0
    %1797 = vmatpush1.bf16.msra.mxu0 0
    %1798 = vmatprep.subr.bf16.mxu0 0
    %1799 = vmatpush1.bf16.msra.mxu0 0
    %1800 = vmatprep.subr.bf16.mxu0 0
    %1801 = vmatpush1.bf16.msra.mxu0 0
    %1802 = vmatprep.subr.bf16.mxu0 0
    %1803 = vmatpush1.bf16.msra.mxu0 0
    %1804 = vmatprep.subr.bf16.mxu0 0
    %1805 = vmatpush1.bf16.msra.mxu0 0
    %1806 = vmatprep.subr.bf16.mxu0 0
    %1807 = vmatpush1.bf16.msra.mxu0 0
    %1808 = vmatprep.subr.bf16.mxu0 0
    %1809 = vmatpush1.bf16.msra.mxu0 0
    %1810 = vmatprep.subr.bf16.mxu0 0
    %1811 = vmatpush1.bf16.msra.mxu0 0
    %1812 = vmatprep.mubr.bf16.mxu0 0
    %1813 = vmatmul.mubr.bf16.gmra.mrb[0].mxu0 %v1733
    %v1814 = vpop.f32.mrb[0].mxu0
    %v1815 = vadd.f32 0.0, %v1814
    %v1816 = vpop.f32.mrb[0].mxu0
    %v1817 = vpop.f32.mrb[0].mxu0
    %v1818 = vadd.f32 0.0, %v1817
    %v1819 = vpop.f32.mrb[0].mxu0
    %1820 = vmatprep.mubr.bf16.mxu0 0
    %1821 = vmatmul.mubr.bf16.gmra.mrb[0].mxu0 %v1736
    %v1822 = vpop.f32.mrb[0].mxu0
    %v1823 = vadd.f32 0.0, %v1822
    %v1824 = vpop.f32.mrb[0].mxu0
    %v1825 = vpop.f32.mrb[0].mxu0
    %v1826 = vadd.f32 0.0, %v1825
    %v1827 = vpop.f32.mrb[0].mxu0
    %1828 = vmatprep.mubr.bf16.mxu0 0
    %1829 = vmatmul.mubr.bf16.gmra.mrb[0].mxu0 %v1739
    %v1830 = vpop.f32.mrb[0].mxu0
    %v1831 = vadd.f32 0.0, %v1830
    %v1832 = vpop.f32.mrb[0].mxu0
    %v1833 = vpop.f32.mrb[0].mxu0
    %v1834 = vadd.f32 0.0, %v1833
    %v1835 = vpop.f32.mrb[0].mxu0
    %1836 = vmatprep.mubr.bf16.mxu0 0
    %1837 = vmatmul.mubr.bf16.gmra.mrb[0].mxu0 %v1742
    %v1838 = vpop.f32.mrb[0].mxu0
    %v1839 = vadd.f32 0.0, %v1838
    %v1840 = vpop.f32.mrb[0].mxu0
    %v1841 = vpop.f32.mrb[0].mxu0
    %v1842 = vadd.f32 0.0, %v1841
    %v1843 = vpop.f32.mrb[0].mxu0
    %1844 = vmatprep.mubr.bf16.mxu0 0
    %1845 = vmatmul.mubr.bf16.gmra.mrb[0].mxu0 %v1745
    %v1846 = vpop.f32.mrb[0].mxu0
    %v1847 = vadd.f32 0.0, %v1846
    %v1848 = vpop.f32.mrb[0].mxu0
    %v1849 = vpop.f32.mrb[0].mxu0
    %v1850 = vadd.f32 0.0, %v1849
    %v1851 = vpop.f32.mrb[0].mxu0
    %1852 = vmatprep.mubr.bf16.mxu0 0
    %1853 = vmatmul.mubr.bf16.gmra.mrb[0].mxu0 %v1748
    %v1854 = vpop.f32.mrb[0].mxu0
    %v1855 = vadd.f32 0.0, %v1854
    %v1856 = vpop.f32.mrb[0].mxu0
    %v1857 = vpop.f32.mrb[0].mxu0
    %v1858 = vadd.f32 0.0, %v1857
    %v1859 = vpop.f32.mrb[0].mxu0
    %1860 = vmatprep.mubr.bf16.mxu0 0
    %1861 = vmatmul.mubr.bf16.gmra.mrb[0].mxu0 %v1751
    %v1862 = vpop.f32.mrb[0].mxu0
    %v1863 = vadd.f32 0.0, %v1862
    %v1864 = vpop.f32.mrb[0].mxu0
    %v1865 = vpop.f32.mrb[0].mxu0
    %v1866 = vadd.f32 0.0, %v1865
    %v1867 = vpop.f32.mrb[0].mxu0
    %1868 = vmatprep.mubr.bf16.mxu0 0
    %1869 = vmatmul.mubr.bf16.gmra.mrb[0].mxu0 %v1754
    %v1870 = vpop.f32.mrb[0].mxu0
    %v1871 = vadd.f32 0.0, %v1870
    %v1872 = vpop.f32.mrb[0].mxu0
    %v1873 = vpop.f32.mrb[0].mxu0
    %v1874 = vadd.f32 0.0, %v1873
    %v1875 = vpop.f32.mrb[0].mxu0
    %1876 = vmatprep.mubr.bf16.mxu0 0
    %1877 = vmatmul.mubr.bf16.gmra.mrb[0].mxu0 %v1757
    %v1878 = vpop.f32.mrb[0].mxu0
    %v1879 = vadd.f32 0.0, %v1878
    %v1880 = vpop.f32.mrb[0].mxu0
    %v1881 = vpop.f32.mrb[0].mxu0
    %v1882 = vadd.f32 0.0, %v1881
    %v1883 = vpop.f32.mrb[0].mxu0
    %1884 = vmatprep.mubr.bf16.mxu0 0
    %1885 = vmatmul.mubr.bf16.gmra.mrb[0].mxu0 %v1760
    %v1886 = vpop.f32.mrb[0].mxu0
    %v1887 = vadd.f32 0.0, %v1886
    %v1888 = vpop.f32.mrb[0].mxu0
    %v1889 = vpop.f32.mrb[0].mxu0
    %v1890 = vadd.f32 0.0, %v1889
    %v1891 = vpop.f32.mrb[0].mxu0
    %1892 = vmatprep.mubr.bf16.mxu0 0
    %1893 = vmatmul.mubr.bf16.gmra.mrb[0].mxu0 %v1763
    %v1894 = vpop.f32.mrb[0].mxu0
    %v1895 = vadd.f32 0.0, %v1894
    %v1896 = vpop.f32.mrb[0].mxu0
    %v1897 = vpop.f32.mrb[0].mxu0
    %v1898 = vadd.f32 0.0, %v1897
    %v1899 = vpop.f32.mrb[0].mxu0
    %1900 = vmatprep.mubr.bf16.mxu0 0
    %1901 = vmatmul.mubr.bf16.gmra.mrb[0].mxu0 %v1766
    %v1902 = vpop.f32.mrb[0].mxu0
    %v1903 = vadd.f32 0.0, %v1902
    %v1904 = vpop.f32.mrb[0].mxu0
    %v1905 = vpop.f32.mrb[0].mxu0
    %v1906 = vadd.f32 0.0, %v1905
    %v1907 = vpop.f32.mrb[0].mxu0
    %1908 = vmatprep.mubr.bf16.mxu0 0
    %1909 = vmatmul.mubr.bf16.gmra.mrb[0].mxu0 %v1769
    %v1910 = vpop.f32.mrb[0].mxu0
    %v1911 = vadd.f32 0.0, %v1910
    %v1912 = vpop.f32.mrb[0].mxu0
    %v1913 = vpop.f32.mrb[0].mxu0
    %v1914 = vadd.f32 0.0, %v1913
    %v1915 = vpop.f32.mrb[0].mxu0
    %1916 = vmatprep.mubr.bf16.mxu0 0
    %1917 = vmatmul.mubr.bf16.gmra.mrb[0].mxu0 %v1772
    %v1918 = vpop.f32.mrb[0].mxu0
    %v1919 = vadd.f32 0.0, %v1918
    %v1920 = vpop.f32.mrb[0].mxu0
    %v1921 = vpop.f32.mrb[0].mxu0
    %v1922 = vadd.f32 0.0, %v1921
    %v1923 = vpop.f32.mrb[0].mxu0
    %1924 = vmatprep.mubr.bf16.mxu0 0
    %1925 = vmatmul.mubr.bf16.gmra.mrb[0].mxu0 %v1775
    %v1926 = vpop.f32.mrb[0].mxu0
    %v1927 = vadd.f32 0.0, %v1926
    %v1928 = vpop.f32.mrb[0].mxu0
    %v1929 = vpop.f32.mrb[0].mxu0
    %v1930 = vadd.f32 0.0, %v1929
    %v1931 = vpop.f32.mrb[0].mxu0
    %1932 = vmatprep.mubr.bf16.mxu0 0
    %1933 = vmatmul.mubr.bf16.gmra.mrb[0].mxu0 %v1778
    %v1934 = vpop.f32.mrb[0].mxu0
    %v1935 = vadd.f32 0.0, %v1934
    %v1936 = vpop.f32.mrb[0].mxu0
    %v1937 = vpop.f32.mrb[0].mxu0
    %v1938 = vadd.f32 0.0, %v1937
    %v1939 = vpop.f32.mrb[0].mxu0
    %1940 = vdwg.mxu0
    %v1941 = vxor.u32 %v1815, 2147483648
    %v1942 = vxor.u32 %v1818, 2147483648
    %v1943 = vxor.u32 %v1823, 2147483648
    %v1944 = vxor.u32 %v1826, 2147483648
    %v1945 = vxor.u32 %v1831, 2147483648
    %v1946 = vxor.u32 %v1834, 2147483648
    %v1947 = vxor.u32 %v1839, 2147483648
    %v1948 = vxor.u32 %v1842, 2147483648
    %v1949 = vxor.u32 %v1847, 2147483648
    %v1950 = vxor.u32 %v1850, 2147483648
    %v1951 = vxor.u32 %v1855, 2147483648
    %v1952 = vxor.u32 %v1858, 2147483648
    %v1953 = vxor.u32 %v1863, 2147483648
    %v1954 = vxor.u32 %v1866, 2147483648
    %v1955 = vxor.u32 %v1871, 2147483648
    %v1956 = vxor.u32 %v1874, 2147483648
    %v1957 = vxor.u32 %v1879, 2147483648
    %v1958 = vxor.u32 %v1882, 2147483648
    %v1959 = vxor.u32 %v1887, 2147483648
    %v1960 = vxor.u32 %v1890, 2147483648
    %v1961 = vxor.u32 %v1895, 2147483648
    %v1962 = vxor.u32 %v1898, 2147483648
    %v1963 = vxor.u32 %v1903, 2147483648
    %v1964 = vxor.u32 %v1906, 2147483648
    %v1965 = vxor.u32 %v1911, 2147483648
    %v1966 = vxor.u32 %v1914, 2147483648
    %v1967 = vxor.u32 %v1919, 2147483648
    %v1968 = vxor.u32 %v1922, 2147483648
    %v1969 = vxor.u32 %v1927, 2147483648
    %v1970 = vxor.u32 %v1930, 2147483648
    %v1971 = vxor.u32 %v1935, 2147483648
    %v1972 = vxor.u32 %v1938, 2147483648
    %v1973 = vmul.f32 %v1941, 1.442695
    %v1974 = vpow.pop %v1973
    %v1975 = vmul.f32 %v1942, 1.442695
    %v1976 = vpow.pop %v1975
    %v1977 = vmul.f32 %v1943, 1.442695
    %v1978 = vpow.pop %v1977
    %v1979 = vmul.f32 %v1944, 1.442695
    %v1980 = vpow.pop %v1979
    %v1981 = vmul.f32 %v1945, 1.442695
    %v1982 = vpow.pop %v1981
    %v1983 = vmul.f32 %v1946, 1.442695
    %v1984 = vpow.pop %v1983
    %v1985 = vmul.f32 %v1947, 1.442695
    %v1986 = vpow.pop %v1985
    %v1987 = vmul.f32 %v1948, 1.442695
    %v1988 = vpow.pop %v1987
    %v1989 = vmul.f32 %v1949, 1.442695
    %v1990 = vpow.pop %v1989
    %v1991 = vmul.f32 %v1950, 1.442695
    %v1992 = vpow.pop %v1991
    %v1993 = vmul.f32 %v1951, 1.442695
    %v1994 = vpow.pop %v1993
    %v1995 = vmul.f32 %v1952, 1.442695
    %v1996 = vpow.pop %v1995
    %v1997 = vmul.f32 %v1953, 1.442695
    %v1998 = vpow.pop %v1997
    %v1999 = vmul.f32 %v1954, 1.442695
    %v2000 = vpow.pop %v1999
    %v2001 = vmul.f32 %v1955, 1.442695
    %v2002 = vpow.pop %v2001
    %v2003 = vmul.f32 %v1956, 1.442695
    %v2004 = vpow.pop %v2003
    %v2005 = vmul.f32 %v1957, 1.442695
    %v2006 = vpow.pop %v2005
    %v2007 = vmul.f32 %v1958, 1.442695
    %v2008 = vpow.pop %v2007
    %v2009 = vmul.f32 %v1959, 1.442695
    %v2010 = vpow.pop %v2009
    %v2011 = vmul.f32 %v1960, 1.442695
    %v2012 = vpow.pop %v2011
    %v2013 = vmul.f32 %v1961, 1.442695
    %v2014 = vpow.pop %v2013
    %v2015 = vmul.f32 %v1962, 1.442695
    %v2016 = vpow.pop %v2015
    %v2017 = vmul.f32 %v1963, 1.442695
    %v2018 = vpow.pop %v2017
    %v2019 = vmul.f32 %v1964, 1.442695
    %v2020 = vpow.pop %v2019
    %v2021 = vmul.f32 %v1965, 1.442695
    %v2022 = vpow.pop %v2021
    %v2023 = vmul.f32 %v1966, 1.442695
    %v2024 = vpow.pop %v2023
    %v2025 = vmul.f32 %v1967, 1.442695
    %v2026 = vpow.pop %v2025
    %v2027 = vmul.f32 %v1968, 1.442695
    %v2028 = vpow.pop %v2027
    %v2029 = vmul.f32 %v1969, 1.442695
    %v2030 = vpow.pop %v2029
    %v2031 = vmul.f32 %v1970, 1.442695
    %v2032 = vpow.pop %v2031
    %v2033 = vmul.f32 %v1971, 1.442695
    %v2034 = vpow.pop %v2033
    %v2035 = vmul.f32 %v1972, 1.442695
    %v2036 = vpow.pop %v2035
    %v2037 = vadd.f32 %v1974, 1.0
    %v2038 = vadd.f32 %v1976, 1.0
    %v2039 = vadd.f32 %v1978, 1.0
    %v2040 = vadd.f32 %v1980, 1.0
    %v2041 = vadd.f32 %v1982, 1.0
    %v2042 = vadd.f32 %v1984, 1.0
    %v2043 = vadd.f32 %v1986, 1.0
    %v2044 = vadd.f32 %v1988, 1.0
    %v2045 = vadd.f32 %v1990, 1.0
    %v2046 = vadd.f32 %v1992, 1.0
    %v2047 = vadd.f32 %v1994, 1.0
    %v2048 = vadd.f32 %v1996, 1.0
    %v2049 = vadd.f32 %v1998, 1.0
    %v2050 = vadd.f32 %v2000, 1.0
    %v2051 = vadd.f32 %v2002, 1.0
    %v2052 = vadd.f32 %v2004, 1.0
    %v2053 = vadd.f32 %v2006, 1.0
    %v2054 = vadd.f32 %v2008, 1.0
    %v2055 = vadd.f32 %v2010, 1.0
    %v2056 = vadd.f32 %v2012, 1.0
    %v2057 = vadd.f32 %v2014, 1.0
    %v2058 = vadd.f32 %v2016, 1.0
    %v2059 = vadd.f32 %v2018, 1.0
    %v2060 = vadd.f32 %v2020, 1.0
    %v2061 = vadd.f32 %v2022, 1.0
    %v2062 = vadd.f32 %v2024, 1.0
    %v2063 = vadd.f32 %v2026, 1.0
    %v2064 = vadd.f32 %v2028, 1.0
    %v2065 = vadd.f32 %v2030, 1.0
    %v2066 = vadd.f32 %v2032, 1.0
    %v2067 = vadd.f32 %v2034, 1.0
    %v2068 = vadd.f32 %v2036, 1.0
    %v2069 = vrcp.pop %v2037
    %v2070 = vmul.f32 1.0, %v2069
    %v2071 = vrcp.pop %v2038
    %v2072 = vmul.f32 1.0, %v2071
    %v2073 = vrcp.pop %v2039
    %v2074 = vmul.f32 1.0, %v2073
    %v2075 = vrcp.pop %v2040
    %v2076 = vmul.f32 1.0, %v2075
    %v2077 = vrcp.pop %v2041
    %v2078 = vmul.f32 1.0, %v2077
    %v2079 = vrcp.pop %v2042
    %v2080 = vmul.f32 1.0, %v2079
    %v2081 = vrcp.pop %v2043
    %v2082 = vmul.f32 1.0, %v2081
    %v2083 = vrcp.pop %v2044
    %v2084 = vmul.f32 1.0, %v2083
    %v2085 = vrcp.pop %v2045
    %v2086 = vmul.f32 1.0, %v2085
    %v2087 = vrcp.pop %v2046
    %v2088 = vmul.f32 1.0, %v2087
    %v2089 = vrcp.pop %v2047
    %v2090 = vmul.f32 1.0, %v2089
    %v2091 = vrcp.pop %v2048
    %v2092 = vmul.f32 1.0, %v2091
    %v2093 = vrcp.pop %v2049
    %v2094 = vmul.f32 1.0, %v2093
    %v2095 = vrcp.pop %v2050
    %v2096 = vmul.f32 1.0, %v2095
    %v2097 = vrcp.pop %v2051
    %v2098 = vmul.f32 1.0, %v2097
    %v2099 = vrcp.pop %v2052
    %v2100 = vmul.f32 1.0, %v2099
    %v2101 = vrcp.pop %v2053
    %v2102 = vmul.f32 1.0, %v2101
    %v2103 = vrcp.pop %v2054
    %v2104 = vmul.f32 1.0, %v2103
    %v2105 = vrcp.pop %v2055
    %v2106 = vmul.f32 1.0, %v2105
    %v2107 = vrcp.pop %v2056
    %v2108 = vmul.f32 1.0, %v2107
    %v2109 = vrcp.pop %v2057
    %v2110 = vmul.f32 1.0, %v2109
    %v2111 = vrcp.pop %v2058
    %v2112 = vmul.f32 1.0, %v2111
    %v2113 = vrcp.pop %v2059
    %v2114 = vmul.f32 1.0, %v2113
    %v2115 = vrcp.pop %v2060
    %v2116 = vmul.f32 1.0, %v2115
    %v2117 = vrcp.pop %v2061
    %v2118 = vmul.f32 1.0, %v2117
    %v2119 = vrcp.pop %v2062
    %v2120 = vmul.f32 1.0, %v2119
    %v2121 = vrcp.pop %v2063
    %v2122 = vmul.f32 1.0, %v2121
    %v2123 = vrcp.pop %v2064
    %v2124 = vmul.f32 1.0, %v2123
    %v2125 = vrcp.pop %v2065
    %v2126 = vmul.f32 1.0, %v2125
    %v2127 = vrcp.pop %v2066
    %v2128 = vmul.f32 1.0, %v2127
    %v2129 = vrcp.pop %v2067
    %v2130 = vmul.f32 1.0, %v2129
    %v2131 = vrcp.pop %v2068
    %v2132 = vmul.f32 1.0, %v2131
    %v2133 = vmul.f32 %v2070, 1.442695
    %v2134 = vpow.pop %v2133
    %v2135 = vmul.f32 %v2072, 1.442695
    %v2136 = vpow.pop %v2135
    %v2137 = vmul.f32 %v2074, 1.442695
    %v2138 = vpow.pop %v2137
    %v2139 = vmul.f32 %v2076, 1.442695
    %v2140 = vpow.pop %v2139
    %v2141 = vmul.f32 %v2078, 1.442695
    %v2142 = vpow.pop %v2141
    %v2143 = vmul.f32 %v2080, 1.442695
    %v2144 = vpow.pop %v2143
    %v2145 = vmul.f32 %v2082, 1.442695
    %v2146 = vpow.pop %v2145
    %v2147 = vmul.f32 %v2084, 1.442695
    %v2148 = vpow.pop %v2147
    %v2149 = vmul.f32 %v2086, 1.442695
    %v2150 = vpow.pop %v2149
    %v2151 = vmul.f32 %v2088, 1.442695
    %v2152 = vpow.pop %v2151
    %v2153 = vmul.f32 %v2090, 1.442695
    %v2154 = vpow.pop %v2153
    %v2155 = vmul.f32 %v2092, 1.442695
    %v2156 = vpow.pop %v2155
    %v2157 = vmul.f32 %v2094, 1.442695
    %v2158 = vpow.pop %v2157
    %v2159 = vmul.f32 %v2096, 1.442695
    %v2160 = vpow.pop %v2159
    %v2161 = vmul.f32 %v2098, 1.442695
    %v2162 = vpow.pop %v2161
    %v2163 = vmul.f32 %v2100, 1.442695
    %v2164 = vpow.pop %v2163
    %v2165 = vmul.f32 %v2102, 1.442695
    %v2166 = vpow.pop %v2165
    %v2167 = vmul.f32 %v2104, 1.442695
    %v2168 = vpow.pop %v2167
    %v2169 = vmul.f32 %v2106, 1.442695
    %v2170 = vpow.pop %v2169
    %v2171 = vmul.f32 %v2108, 1.442695
    %v2172 = vpow.pop %v2171
    %v2173 = vmul.f32 %v2110, 1.442695
    %v2174 = vpow.pop %v2173
    %v2175 = vmul.f32 %v2112, 1.442695
    %v2176 = vpow.pop %v2175
    %v2177 = vmul.f32 %v2114, 1.442695
    %v2178 = vpow.pop %v2177
    %v2179 = vmul.f32 %v2116, 1.442695
    %v2180 = vpow.pop %v2179
    %v2181 = vmul.f32 %v2118, 1.442695
    %v2182 = vpow.pop %v2181
    %v2183 = vmul.f32 %v2120, 1.442695
    %v2184 = vpow.pop %v2183
    %v2185 = vmul.f32 %v2122, 1.442695
    %v2186 = vpow.pop %v2185
    %v2187 = vmul.f32 %v2124, 1.442695
    %v2188 = vpow.pop %v2187
    %v2189 = vmul.f32 %v2126, 1.442695
    %v2190 = vpow.pop %v2189
    %v2191 = vmul.f32 %v2128, 1.442695
    %v2192 = vpow.pop %v2191
    %v2193 = vmul.f32 %v2130, 1.442695
    %v2194 = vpow.pop %v2193
    %v2195 = vmul.f32 %v2132, 1.442695
    %v2196 = vpow.pop %v2195
    %v2197 = vld [vmem:[%s3] sm:$0xf]
    %v2198 = vld [vmem:[%s3 + $0x4] sm:$0xf]
    %v2199 = vld [vmem:[%s3 + $0x8] sm:$0xf]
    %v2200 = vld [vmem:[%s3 + $0xc] sm:$0xf]
    %v2201 = vld [vmem:[%s3 + $0x10] sm:$0xf]
    %v2202 = vld [vmem:[%s3 + $0x14] sm:$0xf]
    %v2203 = vld [vmem:[%s3 + $0x18] sm:$0xf]
    %v2204 = vld [vmem:[%s3 + $0x1c] sm:$0xf]
    %v2205 = vld [vmem:[%s3 + $0x20] sm:$0xf]
    %v2206 = vld [vmem:[%s3 + $0x24] sm:$0xf]
    %v2207 = vld [vmem:[%s3 + $0x28] sm:$0xf]
    %v2208 = vld [vmem:[%s3 + $0x2c] sm:$0xf]
    %v2209 = vld [vmem:[%s3 + $0x30] sm:$0xf]
    %v2210 = vld [vmem:[%s3 + $0x34] sm:$0xf]
    %v2211 = vld [vmem:[%s3 + $0x38] sm:$0xf]
    %v2212 = vld [vmem:[%s3 + $0x3c] sm:$0xf]
    %v2213 = vld [vmem:[%s3 + $0x40] sm:$0xf]
    %v2214 = vld [vmem:[%s3 + $0x44] sm:$0xf]
    %v2215 = vld [vmem:[%s3 + $0x48] sm:$0xf]
    %v2216 = vld [vmem:[%s3 + $0x4c] sm:$0xf]
    %v2217 = vld [vmem:[%s3 + $0x50] sm:$0xf]
    %v2218 = vld [vmem:[%s3 + $0x54] sm:$0xf]
    %v2219 = vld [vmem:[%s3 + $0x58] sm:$0xf]
    %v2220 = vld [vmem:[%s3 + $0x5c] sm:$0xf]
    %v2221 = vld [vmem:[%s3 + $0x60] sm:$0xf]
    %v2222 = vld [vmem:[%s3 + $0x64] sm:$0xf]
    %v2223 = vld [vmem:[%s3 + $0x68] sm:$0xf]
    %v2224 = vld [vmem:[%s3 + $0x6c] sm:$0xf]
    %v2225 = vld [vmem:[%s3 + $0x70] sm:$0xf]
    %v2226 = vld [vmem:[%s3 + $0x74] sm:$0xf]
    %v2227 = vld [vmem:[%s3 + $0x78] sm:$0xf]
    %v2228 = vld [vmem:[%s3 + $0x7c] sm:$0xf]
    %v2229 = vunpack.c.l.bf16 %v2197
    %v2230 = vunpack.c.l.bf16 %v2198
    %v2231 = vunpack.c.l.bf16 %v2199
    %v2232 = vunpack.c.l.bf16 %v2200
    %v2233 = vunpack.c.l.bf16 %v2201
    %v2234 = vunpack.c.l.bf16 %v2202
    %v2235 = vunpack.c.l.bf16 %v2203
    %v2236 = vunpack.c.l.bf16 %v2204
    %v2237 = vunpack.c.l.bf16 %v2205
    %v2238 = vunpack.c.l.bf16 %v2206
    %v2239 = vunpack.c.l.bf16 %v2207
    %v2240 = vunpack.c.l.bf16 %v2208
    %v2241 = vunpack.c.l.bf16 %v2209
    %v2242 = vunpack.c.l.bf16 %v2210
    %v2243 = vunpack.c.l.bf16 %v2211
    %v2244 = vunpack.c.l.bf16 %v2212
    %v2245 = vunpack.c.l.bf16 %v2213
    %v2246 = vunpack.c.l.bf16 %v2214
    %v2247 = vunpack.c.l.bf16 %v2215
    %v2248 = vunpack.c.l.bf16 %v2216
    %v2249 = vunpack.c.l.bf16 %v2217
    %v2250 = vunpack.c.l.bf16 %v2218
    %v2251 = vunpack.c.l.bf16 %v2219
    %v2252 = vunpack.c.l.bf16 %v2220
    %v2253 = vunpack.c.l.bf16 %v2221
    %v2254 = vunpack.c.l.bf16 %v2222
    %v2255 = vunpack.c.l.bf16 %v2223
    %v2256 = vunpack.c.l.bf16 %v2224
    %v2257 = vunpack.c.l.bf16 %v2225
    %v2258 = vunpack.c.l.bf16 %v2226
    %v2259 = vunpack.c.l.bf16 %v2227
    %v2260 = vunpack.c.l.bf16 %v2228
    %v2261 = vmul.f32 %v2134, %v2229
    %v2262 = vmul.f32 %v2136, %v2230
    %v2263 = vmul.f32 %v2138, %v2231
    %v2264 = vmul.f32 %v2140, %v2232
    %v2265 = vmul.f32 %v2142, %v2233
    %v2266 = vmul.f32 %v2144, %v2234
    %v2267 = vmul.f32 %v2146, %v2235
    %v2268 = vmul.f32 %v2148, %v2236
    %v2269 = vmul.f32 %v2150, %v2237
    %v2270 = vmul.f32 %v2152, %v2238
    %v2271 = vmul.f32 %v2154, %v2239
    %v2272 = vmul.f32 %v2156, %v2240
    %v2273 = vmul.f32 %v2158, %v2241
    %v2274 = vmul.f32 %v2160, %v2242
    %v2275 = vmul.f32 %v2162, %v2243
    %v2276 = vmul.f32 %v2164, %v2244
    %v2277 = vmul.f32 %v2166, %v2245
    %v2278 = vmul.f32 %v2168, %v2246
    %v2279 = vmul.f32 %v2170, %v2247
    %v2280 = vmul.f32 %v2172, %v2248
    %v2281 = vmul.f32 %v2174, %v2249
    %v2282 = vmul.f32 %v2176, %v2250
    %v2283 = vmul.f32 %v2178, %v2251
    %v2284 = vmul.f32 %v2180, %v2252
    %v2285 = vmul.f32 %v2182, %v2253
    %v2286 = vmul.f32 %v2184, %v2254
    %v2287 = vmul.f32 %v2186, %v2255
    %v2288 = vmul.f32 %v2188, %v2256
    %v2289 = vmul.f32 %v2190, %v2257
    %v2290 = vmul.f32 %v2192, %v2258
    %v2291 = vmul.f32 %v2194, %v2259
    %v2292 = vmul.f32 %v2196, %v2260
    %v2293 = vlaneseq
    %v2294 = vand.u32 %v2293, 127
    %v2295 = vadd.s32 %v2294, 128
    %v2296 = vmul.u32 %v888, 16
    %v2297 = vmul.u32 %v889, 16
    %vm2298 = vcmp.ge.s32.totalorder %v2294, %v2296
    %vm2299 = vcmp.ge.s32.totalorder %v2295, %v2296
    %vm2300 = vcmp.ge.s32.totalorder %v2294, %v2297
    %vm2301 = vcmp.ge.s32.totalorder %v2295, %v2297
    %v2302 = vadd.s32 %v2296, 16
    %v2303 = vadd.s32 %v2297, 16
    %vm2304 = vcmp.lt.s32.totalorder %v2294, %v2302
    %vm2305 = vcmp.lt.s32.totalorder %v2295, %v2302
    %vm2306 = vcmp.lt.s32.totalorder %v2294, %v2303
    %vm2307 = vcmp.lt.s32.totalorder %v2295, %v2303
    %vm2308 = vmand %vm2298, %vm2304
    %vm2309 = vmand %vm2299, %vm2305
    %vm2310 = vmand %vm2300, %vm2306
    %vm2311 = vmand %vm2301, %vm2307
    %v2312 = vsel %vm2308, 1, 0
    %v2313 = vsel %vm2309, 1, 0
    %v2314 = vsel %vm2310, 1, 0
    %v2315 = vsel %vm2311, 1, 0
    %v2316 = vcvt.s32.f32 %v2312
    %v2317 = vcvt.s32.f32 %v2313
    %v2318 = vcvt.s32.f32 %v2314
    %v2319 = vcvt.s32.f32 %v2315
    %v2320 = vpack.c.bf16 %v2318, %v2316
    %v2321 = vpack.c.bf16 %v2319, %v2317
    %v2322 = vpack.c.bf16 %v2262, %v2261
    %v2323 = vpack.c.bf16 %v2264, %v2263
    %v2324 = vpack.c.bf16 %v2266, %v2265
    %v2325 = vpack.c.bf16 %v2268, %v2267
    %v2326 = vpack.c.bf16 %v2270, %v2269
    %v2327 = vpack.c.bf16 %v2272, %v2271
    %v2328 = vpack.c.bf16 %v2274, %v2273
    %v2329 = vpack.c.bf16 %v2276, %v2275
    %v2330 = vpack.c.bf16 %v2278, %v2277
    %v2331 = vpack.c.bf16 %v2280, %v2279
    %v2332 = vpack.c.bf16 %v2282, %v2281
    %v2333 = vpack.c.bf16 %v2284, %v2283
    %v2334 = vpack.c.bf16 %v2286, %v2285
    %v2335 = vpack.c.bf16 %v2288, %v2287
    %v2336 = vpack.c.bf16 %v2290, %v2289
    %v2337 = vpack.c.bf16 %v2292, %v2291
    %2338 = vmatprep.subr.bf16.mxu0 0
    %2339 = vmatpush1.bf16.msra.mxu0 %v2322
    %2340 = vmatprep.subr.bf16.mxu0 0
    %2341 = vmatpush1.bf16.msra.mxu0 %v2323
    %2342 = vmatprep.subr.bf16.mxu0 0
    %2343 = vmatpush1.bf16.msra.mxu0 %v2324
    %2344 = vmatprep.subr.bf16.mxu0 0
    %2345 = vmatpush1.bf16.msra.mxu0 %v2325
    %2346 = vmatprep.subr.bf16.mxu0 0
    %2347 = vmatpush1.bf16.msra.mxu0 %v2326
    %2348 = vmatprep.subr.bf16.mxu0 0
    %2349 = vmatpush1.bf16.msra.mxu0 %v2327
    %2350 = vmatprep.subr.bf16.mxu0 0
    %2351 = vmatpush1.bf16.msra.mxu0 %v2328
    %2352 = vmatprep.subr.bf16.mxu0 0
    %2353 = vmatpush1.bf16.msra.mxu0 %v2329
    %2354 = vmatprep.subr.bf16.mxu0 0
    %2355 = vmatpush1.bf16.msra.mxu0 %v2330
    %2356 = vmatprep.subr.bf16.mxu0 0
    %2357 = vmatpush1.bf16.msra.mxu0 %v2331
    %2358 = vmatprep.subr.bf16.mxu0 0
    %2359 = vmatpush1.bf16.msra.mxu0 %v2332
    %2360 = vmatprep.subr.bf16.mxu0 0
    %2361 = vmatpush1.bf16.msra.mxu0 %v2333
    %2362 = vmatprep.subr.bf16.mxu0 0
    %2363 = vmatpush1.bf16.msra.mxu0 %v2334
    %2364 = vmatprep.subr.bf16.mxu0 0
    %2365 = vmatpush1.bf16.msra.mxu0 %v2335
    %2366 = vmatprep.subr.bf16.mxu0 0
    %2367 = vmatpush1.bf16.msra.mxu0 %v2336
    %2368 = vmatprep.subr.bf16.mxu0 0
    %2369 = vmatpush1.bf16.msra.mxu0 %v2337
    %2370 = vmatprep.mubr.bf16.mxu0 %v2321
    %2371 = vmatmul.mubr.bf16.gmra.mrb[0].mxu0 %v2320
    %v2372 = vpop.f32.mrb[0].mxu0
    %v2373 = vadd.f32 0.0, %v2372
    %v2374 = vpop.f32.mrb[0].mxu0
    %v2375 = vpop.f32.mrb[0].mxu0
    %v2376 = vadd.f32 0.0, %v2375
    %v2377 = vpop.f32.mrb[0].mxu0
    %2378 = vdwg.mxu0
    %v2379 = vpack.c.bf16 %v2136, %v2134
    %v2380 = vpack.c.bf16 %v2140, %v2138
    %v2381 = vpack.c.bf16 %v2144, %v2142
    %v2382 = vpack.c.bf16 %v2148, %v2146
    %v2383 = vpack.c.bf16 %v2152, %v2150
    %v2384 = vpack.c.bf16 %v2156, %v2154
    %v2385 = vpack.c.bf16 %v2160, %v2158
    %v2386 = vpack.c.bf16 %v2164, %v2162
    %v2387 = vpack.c.bf16 %v2168, %v2166
    %v2388 = vpack.c.bf16 %v2172, %v2170
    %v2389 = vpack.c.bf16 %v2176, %v2174
    %v2390 = vpack.c.bf16 %v2180, %v2178
    %v2391 = vpack.c.bf16 %v2184, %v2182
    %v2392 = vpack.c.bf16 %v2188, %v2186
    %v2393 = vpack.c.bf16 %v2192, %v2190
    %v2394 = vpack.c.bf16 %v2196, %v2194
    %2395 = vmatprep.subr.bf16.mxu0 0
    %2396 = vmatpush1.bf16.msra.mxu0 %v2379
    %2397 = vmatprep.subr.bf16.mxu0 0
    %2398 = vmatpush1.bf16.msra.mxu0 %v2380
    %2399 = vmatprep.subr.bf16.mxu0 0
    %2400 = vmatpush1.bf16.msra.mxu0 %v2381
    %2401 = vmatprep.subr.bf16.mxu0 0
    %2402 = vmatpush1.bf16.msra.mxu0 %v2382
    %2403 = vmatprep.subr.bf16.mxu0 0
    %2404 = vmatpush1.bf16.msra.mxu0 %v2383
    %2405 = vmatprep.subr.bf16.mxu0 0
    %2406 = vmatpush1.bf16.msra.mxu0 %v2384
    %2407 = vmatprep.subr.bf16.mxu0 0
    %2408 = vmatpush1.bf16.msra.mxu0 %v2385
    %2409 = vmatprep.subr.bf16.mxu0 0
    %2410 = vmatpush1.bf16.msra.mxu0 %v2386
    %2411 = vmatprep.subr.bf16.mxu0 0
    %2412 = vmatpush1.bf16.msra.mxu0 %v2387
    %2413 = vmatprep.subr.bf16.mxu0 0
    %2414 = vmatpush1.bf16.msra.mxu0 %v2388
    %2415 = vmatprep.subr.bf16.mxu0 0
    %2416 = vmatpush1.bf16.msra.mxu0 %v2389
    %2417 = vmatprep.subr.bf16.mxu0 0
    %2418 = vmatpush1.bf16.msra.mxu0 %v2390
    %2419 = vmatprep.subr.bf16.mxu0 0
    %2420 = vmatpush1.bf16.msra.mxu0 %v2391
    %2421 = vmatprep.subr.bf16.mxu0 0
    %2422 = vmatpush1.bf16.msra.mxu0 %v2392
    %2423 = vmatprep.subr.bf16.mxu0 0
    %2424 = vmatpush1.bf16.msra.mxu0 %v2393
    %2425 = vmatprep.subr.bf16.mxu0 0
    %2426 = vmatpush1.bf16.msra.mxu0 %v2394
    %2427 = vmatprep.mubr.bf16.mxu0 %v2321
    %2428 = vmatmul.mubr.bf16.gmra.mrb[0].mxu0 %v2320
    %v2429 = vpop.f32.mrb[0].mxu0
    %v2430 = vadd.f32 0.0, %v2429
    %v2431 = vpop.f32.mrb[0].mxu0
    %v2432 = vpop.f32.mrb[0].mxu0
    %v2433 = vadd.f32 0.0, %v2432
    %v2434 = vpop.f32.mrb[0].mxu0
    %2435 = vdwg.mxu0
    %v2436 = vrcp.pop %v2430
    %v2437 = vmul.f32 %v2373, %v2436
    %v2438 = vrcp.pop %v2433
    %v2439 = vmul.f32 %v2376, %v2438
    %v2440 = vld [vmem:[%s8] sm:$0xff]
    %v2441 = vadd.f32 %v2440, %v1035
    %v2442 = vld [vmem:[%s9] sm:$0xff]
    %v2443 = vadd.f32 %v2442, %v1038
    %v2444 = vadd.f32 %v2443, %v2437
    %v2445 = vadd.f32 %v2444, %v2439
    %v2446 = vmul.f32 %v2441, %v2445
    %v2447 = vsel %vm249, %v2446, 0.0
    %2448 = vadd.xlane.f32.xlu0 %v2447
    %v2449 = vpop.xlane.xlu0 %2448
    %v2450 = vxor.u32 %v2449, 2147483648
    %v2451 = vmul.f32 %v2450, 1.442695
    %v2452 = vpow.pop %v2451
    %v2453 = vadd.f32 %v2452, 1.0
    %v2454 = vrcp.pop %v2453
    %v2455 = vmul.f32 1.0, %v2454
    %2456 = vst [vmem:[%s10] sm:$0xff] %v2455
    %v2457 = vstv %s983
    %2458 = vst [vmem:[#allocation2] sm:$0x1] %v2457
    // Predicated region
    $region42: #{ckan_forward.1} parent=1 // pred_check
      _
    $region43: #{ckan_forward.1} parent=1 // pred_check_branch
      %2460 = sbr.rel (0) target = $region45
    $region44: #{ckan_forward.1} parent=1 // pred_region
      _
    $region45: #{ckan_forward.1} parent=1 // pred_fallthru
      _
    // Predicated region
    $region46: #{ckan_forward.1} parent=1 // pred_check
      _
    $region47: #{ckan_forward.1} parent=1 // pred_check_branch
      %2462 = sbr.rel (0) target = $region49
    $region48: #{ckan_forward.1} parent=1 // pred_region
      %s2464 = ssub.s32 16, 16
      %2465 = vsyncadd [#allocation3], %s2464
      %s2467 = sshll.u32 [#allocation2], 4
      %s2468 = int_to_ptr.vmem [resolvable:$true] %s2467
      %2470 = dma.vmem_to_hbm [thread:$0]  %s2468, 16, %s11, [#allocation3]
    $region49: #{ckan_forward.1} parent=1 // pred_fallthru
      _
    // Predicated region
    $region50: #{ckan_forward.1} parent=1 // pred_check
      _
    $region51: #{ckan_forward.1} parent=1 // pred_check_branch
      %2472 = sbr.rel (0) target = $region53
    $region52: #{ckan_forward.1} parent=1 // pred_region
      _
    $region53: #{ckan_forward.1} parent=1 // pred_fallthru
      _
    // Predicated region
    $region54: #{ckan_forward.1} parent=1 // pred_check
      _
    $region55: #{ckan_forward.1} parent=1 // pred_check_branch
      %2474 = sbr.rel (0) target = $region57
    $region56: #{ckan_forward.1} parent=1 // pred_region
      %2475 = dma.done [#allocation3], 16
    $region57: #{ckan_forward.1} parent=1 // pred_fallthru
      _
    %2476 = vsyncpa [#allocation3], 1

</llo_original>
